<compile_context>
chip_gen: v6e
topology: v6e:2x2x1
jax: 0.10.0
libtpu: 0.0.40
codegen_flags: <defaults>
</compile_context>

<pallas_src>
import math
from functools import partial

import jax
import jax.numpy as jnp
from jax import lax
from jax.experimental import pallas as pl
from jax.experimental.pallas import tpu as pltpu


def _round_up(n, m):
    return (n + m - 1) // m * m


# Row indices inside the packed per-layer "small params" slab.
_R_BQ, _R_BK, _R_BV, _R_BO = 0, 1, 2, 3
_R_LN1W, _R_LN1B = 4, 5
_R_B1, _R_B2 = 6, 7
_R_LN2W, _R_LN2B = 8, 9
_SMALL_ROWS = 16          # padded to a sublane multiple


def _encoder_stack_kernel(x_ref, a_ref, wqkv_ref, wo_ref, w1_ref, w2_ref,
                          sp_ref, o_ref, *, num_heads, head_dim, d_model,
                          d_pad, f_pad, seq, batch_blk):
    l = pl.program_id(1)                       # layer axis ("arbitrary")
    bf16 = jnp.bfloat16
    f32 = jnp.float32
    H = num_heads
    hdp = d_pad // H
    scale = 1.0 / math.sqrt(head_dim)          # real head dim, not padded
    inv_d = 1.0 / d_model                      # LN stats over the real D

    # Layer 0: seed the layer-resident activation block from the kernel input.
    @pl.when(l == 0)
    def _():
        o_ref[...] = x_ref[...]

    x = o_ref[...]                             # (rows, d_pad) f32, padded lanes == 0
    rows = x.shape[0]
    sp = sp_ref[0]                             # (_SMALL_ROWS, Pmax) packed small params
    xb = x.astype(bf16)

    # ---- self-attention --------------------------------------------------
    # One wide fused QKV projection (K = d_pad, N = 3*d_pad), 128-aligned splits.
    qkv = jnp.dot(xb, wqkv_ref[0], preferred_element_type=f32)     # (rows, 3*d_pad)
    q = qkv[:, 0 * d_pad:1 * d_pad] + sp[_R_BQ:_R_BQ + 1, :d_pad]
    k = qkv[:, 1 * d_pad:2 * d_pad] + sp[_R_BK:_R_BK + 1, :d_pad]
    v = qkv[:, 2 * d_pad:3 * d_pad] + sp[_R_BV:_R_BV + 1, :d_pad]

    # Single bf16 cast right after the bias add (not per head slice).
    q3 = q.astype(bf16).reshape(batch_blk, seq, d_pad)
    k3 = k.astype(bf16).reshape(batch_blk, seq, d_pad)
    v3 = v.astype(bf16).reshape(batch_blk, seq, d_pad)

    head_out = []
    for h in range(H):                          # small H; slices are hdp-aligned
        lo = h * hdp
        qh = q3[:, :, lo:lo + hdp]
        kh = k3[:, :, lo:lo + hdp]
        vh = v3[:, :, lo:lo + hdp]
        s = jnp.einsum("bqd,bkd->bqk", qh, kh,
                       preferred_element_type=f32) * scale
        s = s - jnp.max(s, axis=-1, keepdims=True)
        e = jnp.exp(s)
        # approx reciprocal (EUP): attention rows sum to ~1 (documented trade).
        p = e * pl.reciprocal(jnp.sum(e, axis=-1, keepdims=True), approx=True)
        oh = jnp.einsum("bqk,bkd->bqd", p.astype(bf16), vh,
                        preferred_element_type=f32)
        head_out.append(oh.reshape(rows, hdp))

    # Single out-projection, contracting dim K = d_pad (head concat folded in).
    cat = jnp.concatenate(head_out, axis=-1).astype(bf16)          # (rows, d_pad)
    attn = jnp.dot(cat, wo_ref[0], preferred_element_type=f32)
    attn = attn + sp[_R_BO:_R_BO + 1, :d_pad]

    # ---- residual + LayerNorm 1 (stats over the real d_model lanes) -------
    x = x + attn
    mu = jnp.sum(x, axis=-1, keepdims=True) * inv_d
    var = jnp.sum(x * x, axis=-1, keepdims=True) * inv_d - mu * mu
    x = (x - mu) * lax.rsqrt(var + 1e-5)
    x = x * sp[_R_LN1W:_R_LN1W + 1, :d_pad] + sp[_R_LN1B:_R_LN1B + 1, :d_pad]

    # ---- feed-forward: Linear -> PReLU -> Linear ---------------------------
    a = a_ref[l]                                # PReLU slope (SMEM scalar path)
    h1 = jnp.dot(x.astype(bf16), w1_ref[0], preferred_element_type=f32)
    h1 = h1 + sp[_R_B1:_R_B1 + 1, :f_pad]
    h1 = jnp.maximum(h1, 0.0) + a * jnp.minimum(h1, 0.0)
    h2 = jnp.dot(h1.astype(bf16), w2_ref[0], preferred_element_type=f32)
    h2 = h2 + sp[_R_B2:_R_B2 + 1, :d_pad]

    # ---- residual + LayerNorm 2 --------------------------------------------
    x = x + h2
    mu = jnp.sum(x, axis=-1, keepdims=True) * inv_d
    var = jnp.sum(x * x, axis=-1, keepdims=True) * inv_d - mu * mu
    x = (x - mu) * lax.rsqrt(var + 1e-5)
    x = x * sp[_R_LN2W:_R_LN2W + 1, :d_pad] + sp[_R_LN2B:_R_LN2B + 1, :d_pad]

    o_ref[...] = x                              # padded lanes stay exactly 0


def transformer_encoder_pallas(x, layer_params, num_heads, *, batch_block=1):
    """x: (B, S, D) f32, layer_params: list of per-layer dicts (PyTorch layout)."""
    B, S, D = x.shape
    L = len(layer_params)
    F_dim = layer_params[0]["w1"].shape[0]
    H = num_heads
    hd = D // H
    bf16 = jnp.bfloat16
    f32 = jnp.float32

    # Lane-dense padding; per-head padded layout preserves the head structure.
    Dp = _round_up(D, 128)
    while Dp % H:
        Dp += 128
    hdp = Dp // H
    Fp = _round_up(F_dim, 128)
    Pmax = max(Dp, Fp)

    if B % batch_block != 0 or (batch_block * S) % 8 != 0:
        batch_block = B                         # fall back to one resident slab
    n_row_blocks = B // batch_block
    rows_blk = batch_block * S

    def pad_qkv_part(w, b):
        # w: (D, D) PyTorch (out, in); out dim j = h*hd + d  ->  padded col h*hdp + d
        wt = w.T.astype(f32)                                      # (in D, out D)
        w3 = wt.reshape(D, H, hd)
        w3p = jnp.zeros((D, H, hdp), f32).at[:, :, :hd].set(w3)
        wp = jnp.zeros((Dp, Dp), f32).at[:D].set(w3p.reshape(D, H * hdp))
        bp = jnp.zeros((H, hdp), f32).at[:, :hd].set(b.reshape(H, hd)).reshape(Dp)
        return wp, bp

    def pad_wo(w, b):
        # w: (D, D) PyTorch (out, in=concat); rows use the padded head layout
        wt = w.T.astype(f32)                                      # (concat D, out D)
        w3 = wt.reshape(H, hd, D)
        w3p = jnp.zeros((H, hdp, D), f32).at[:, :hd, :].set(w3)
        wp = jnp.zeros((Dp, Dp), f32).at[:, :D].set(w3p.reshape(Dp, D))
        bp = jnp.zeros((Dp,), f32).at[:D].set(b)
        return wp, bp

    def pad2(wt, r, c):
        return jnp.zeros((r, c), f32).at[:wt.shape[0], :wt.shape[1]].set(wt.astype(f32))

    def pad1(v, n):
        return jnp.zeros((n,), f32).at[:v.shape[0]].set(v.astype(f32))

    wqkv_l, wo_l, w1_l, w2_l, small_l, a_l = [], [], [], [], [], []
    for p in layer_params:
        wq, bq = pad_qkv_part(p["wqkv"][0 * D:1 * D], p["bqkv"][0 * D:1 * D])
        wk, bk = pad_qkv_part(p["wqkv"][1 * D:2 * D], p["bqkv"][1 * D:2 * D])
        wv, bv = pad_qkv_part(p["wqkv"][2 * D:3 * D], p["bqkv"][2 * D:3 * D])
        wo, bo = pad_wo(p["wo"], p["bo"])
        wqkv_l.append(jnp.concatenate([wq, wk, wv], axis=1).astype(bf16))  # (Dp, 3Dp)
        wo_l.append(wo.astype(bf16))                                        # (Dp, Dp)
        w1_l.append(pad2(p["w1"].T, Dp, Fp).astype(bf16))                   # (Dp, Fp)
        w2_l.append(pad2(p["w2"].T, Fp, Dp).astype(bf16))                   # (Fp, Dp)

        rows = [bq, bk, bv, bo,
                pad1(p["ln1w"], Dp), pad1(p["ln1b"], Dp),
                pad1(p["b1"], Fp), pad1(p["b2"], Dp),
                pad1(p["ln2w"], Dp), pad1(p["ln2b"], Dp)]
        small = jnp.zeros((_SMALL_ROWS, Pmax), f32)
        for r, vrow in enumerate(rows):
            small = small.at[r, :vrow.shape[0]].set(vrow)
        small_l.append(small)
        a_l.append(jnp.asarray(p["a"], f32).reshape(()))

    wqkv_s = jnp.stack(wqkv_l)           # (L, Dp, 3Dp) bf16
    wo_s = jnp.stack(wo_l)               # (L, Dp, Dp)  bf16
    w1_s = jnp.stack(w1_l)               # (L, Dp, Fp)  bf16
    w2_s = jnp.stack(w2_l)               # (L, Fp, Dp)  bf16
    small_s = jnp.stack(small_l)         # (L, 16, Pmax) f32 -> ONE DMA per layer
    a_s = jnp.stack(a_l)                 # (L,) f32 in SMEM

    x_pad = jnp.zeros((B * S, Dp), f32).at[:, :D].set(x.reshape(B * S, D))

    resident = pl.BlockSpec((rows_blk, Dp), lambda b, l: (b, 0))

    def per_layer(shape):
        nd = len(shape)
        return pl.BlockSpec((1,) + tuple(shape), lambda b, l: (l,) + (0,) * nd)

    in_specs = [
        resident,                                            # activation slab seed
        pl.BlockSpec(memory_space=pltpu.MemorySpace.SMEM),   # PReLU slopes (L,)
        per_layer((Dp, 3 * Dp)),                             # fused qkv weight
        per_layer((Dp, Dp)),                                 # out-proj weight
        per_layer((Dp, Fp)),                                 # ff w1
        per_layer((Fp, Dp)),                                 # ff w2
        per_layer((_SMALL_ROWS, Pmax)),                      # packed small params
    ]

    kernel = partial(_encoder_stack_kernel, num_heads=H, head_dim=hd,
                     d_model=D, d_pad=Dp, f_pad=Fp, seq=S,
                     batch_blk=batch_block)

    out = pl.pallas_call(
        kernel,
        out_shape=jax.ShapeDtypeStruct((B * S, Dp), f32),
        grid=(n_row_blocks, L),
        in_specs=in_specs,
        out_specs=resident,
        input_output_aliases={0: 0},     # activation HBM slab reused for output
        compiler_params=pltpu.CompilerParams(
            dimension_semantics=("parallel", "arbitrary"),
            vmem_limit_bytes=48 * 1024 * 1024),
    )(x_pad, a_s, wqkv_s, wo_s, w1_s, w2_s, small_s)

    return out[:, :D].reshape(B, S, D)


# --------- pure-JAX f32 reference (numerical check only) ---------
def _layernorm(x, w, b, eps=1e-5):
    mu = x.mean(-1, keepdims=True)
    var = ((x - mu) ** 2).mean(-1, keepdims=True)
    return (x - mu) / jnp.sqrt(var + eps) * w + b


def encoder_block_ref(x, p, num_heads):
    B, S, D = x.shape
    H, hd = num_heads, D // num_heads
    qkv = jnp.einsum("bsd,ed->bse", x, p["wqkv"]) + p["bqkv"]
    q, k, v = qkv[..., :D], qkv[..., D:2 * D], qkv[..., 2 * D:]
    split = lambda t: t.reshape(B, S, H, hd).transpose(0, 2, 1, 3)
    qh, kh, vh = split(q), split(k), split(v)
    s = jnp.einsum("bhqd,bhkd->bhqk", qh, kh) / math.sqrt(hd)
    pa = jax.nn.softmax(s, axis=-1)
    o = jnp.einsum("bhqk,bhkd->bhqd", pa, vh).transpose(0, 2, 1, 3).reshape(B, S, D)
    o = jnp.einsum("bsd,ed->bse", o, p["wo"]) + p["bo"]
    x = _layernorm(x + o, p["ln1w"], p["ln1b"])
    h1 = jnp.einsum("bsd,fd->bsf", x, p["w1"]) + p["b1"]
    h1 = jnp.maximum(h1, 0.0) + p["a"] * jnp.minimum(h1, 0.0)
    h2 = jnp.einsum("bsf,df->bsd", h1, p["w2"]) + p["b2"]
    x = _layernorm(x + h2, p["ln2w"], p["ln2b"])
    return x


def init_layer_params(key, input_dim, dim_feedforward):
    ks = jax.random.split(key, 8)
    s = 0.05
    D, Fd = input_dim, dim_feedforward
    return {
        "wqkv": s * jax.random.normal(ks[0], (3 * D, D), jnp.float32),
        "bqkv": s * jax.random.normal(ks[1], (3 * D,), jnp.float32),
        "wo":   s * jax.random.normal(ks[2], (D, D), jnp.float32),
        "bo":   s * jax.random.normal(ks[3], (D,), jnp.float32),
        "ln1w": jnp.ones((D,), jnp.float32),
        "ln1b": jnp.zeros((D,), jnp.float32),
        "w1":   s * jax.random.normal(ks[4], (Fd, D), jnp.float32),
        "b1":   s * jax.random.normal(ks[5], (Fd,), jnp.float32),
        "a":    jnp.full((), 0.25, jnp.float32),   # PReLU default slope
        "w2":   s * jax.random.normal(ks[6], (D, Fd), jnp.float32),
        "b2":   s * jax.random.normal(ks[7], (D,), jnp.float32),
        "ln2w": jnp.ones((D,), jnp.float32),
        "ln2b": jnp.zeros((D,), jnp.float32),
    }


if __name__ == "__main__":
    # Small shapes consistent with the module's forward.
    B, S, D = 2, 8, 32          # batch, seq_len, input_dim
    num_heads = 4
    dim_feedforward = 64
    num_layers = 2

    root = jax.random.PRNGKey(0)
    kx, *kl = jax.random.split(root, 1 + num_layers)
    x = jax.random.normal(kx, (B, S, D), jnp.float32)
    layer_params = [init_layer_params(k, D, dim_feedforward) for k in kl]

    out = transformer_encoder_pallas(x, layer_params, num_heads)
    out = jax.block_until_ready(out)

    ref = x
    for p in layer_params:
        ref = encoder_block_ref(ref, p, num_heads)

    assert out.shape == (B, S, D)
    # bf16 matmuls + approx softmax reciprocal -> relaxed tolerance vs f32 ref.
    assert jnp.allclose(out, ref, atol=5e-2, rtol=5e-2), "mismatch vs reference"

    print("KERNEL_OK")
</pallas_src>

<mosaic_0001>
module attributes {stable_mosaic.version = 11 : i64} {
  func.func @_encoder_stack_kernel(%arg0: i32, %arg1: i32, %arg2: memref<8x128xf32, #tpu.memory_space<vmem>>, %arg3: memref<2xf32, #tpu.memory_space<smem>>, %arg4: memref<1x128x384xbf16, #tpu.memory_space<vmem>>, %arg5: memref<1x128x128xbf16, #tpu.memory_space<vmem>>, %arg6: memref<1x128x128xbf16, #tpu.memory_space<vmem>>, %arg7: memref<1x128x128xbf16, #tpu.memory_space<vmem>>, %arg8: memref<1x16x128xf32, #tpu.memory_space<vmem>>, %arg9: memref<8x128xf32, #tpu.memory_space<vmem>>) attributes {dimension_semantics = [#tpu.dimension_semantics<parallel>, #tpu.dimension_semantics<arbitrary>], iteration_bounds = array<i64: 2, 2>, scalar_prefetch = 0 : i64, scratch_operands = 0 : i64, tpu.core_type = #tpu.core_type<tc>, window_params = [{transform_indices = @transform_0, window_bounds = array<i64: 8, 128>}, {transform_indices = @transform_1, window_bounds = array<i64: 2>}, {transform_indices = @transform_2, window_bounds = array<i64: 1, 128, 384>}, {transform_indices = @transform_3, window_bounds = array<i64: 1, 128, 128>}, {transform_indices = @transform_4, window_bounds = array<i64: 1, 128, 128>}, {transform_indices = @transform_5, window_bounds = array<i64: 1, 128, 128>}, {transform_indices = @transform_6, window_bounds = array<i64: 1, 16, 128>}, {transform_indices = @transform_7, window_bounds = array<i64: 8, 128>}]} {
    %c0_i32 = arith.constant 0 : i32
    %0 = arith.cmpi eq, %arg1, %c0_i32 : i32
    %1 = arith.extui %0 : i1 to i32
    %c0_i32_0 = arith.constant 0 : i32
    %2 = arith.cmpi ne, %1, %c0_i32_0 : i32
    scf.if %2 {
      %c0_54 = arith.constant 0 : index
      %c0_55 = arith.constant 0 : index
      %186 = vector.load %arg2[%c0_54, %c0_55] : memref<8x128xf32, #tpu.memory_space<vmem>>, vector<8x128xf32>
      %c0_56 = arith.constant 0 : index
      %c0_57 = arith.constant 0 : index
      %187 = vector.load %arg9[%c0_56, %c0_57] : memref<8x128xf32, #tpu.memory_space<vmem>>, vector<8x128xf32>
      tpu.vector_store %arg9[%c0_56, %c0_57], %186 {strides = array<i32>} : memref<8x128xf32, #tpu.memory_space<vmem>>, vector<8x128xf32>,
    } else {
    }
    %c0 = arith.constant 0 : index
    %c0_1 = arith.constant 0 : index
    %3 = vector.load %arg9[%c0, %c0_1] : memref<8x128xf32, #tpu.memory_space<vmem>>, vector<8x128xf32>
    %c0_2 = arith.constant 0 : index
    %c0_3 = arith.constant 0 : index
    %c0_4 = arith.constant 0 : index
    %4 = vector.load %arg8[%c0_2, %c0_3, %c0_4] : memref<1x16x128xf32, #tpu.memory_space<vmem>>, vector<1x16x128xf32>
    %5 = vector.shape_cast %4 : vector<1x16x128xf32> to vector<16x128xf32>
    %6 = arith.truncf %3 : vector<8x128xf32> to vector<8x128xbf16>
    %c0_5 = arith.constant 0 : index
    %c0_6 = arith.constant 0 : index
    %c0_7 = arith.constant 0 : index
    %7 = vector.load %arg4[%c0_5, %c0_6, %c0_7] : memref<1x128x384xbf16, #tpu.memory_space<vmem>>, vector<1x128x384xbf16>
    %8 = vector.shape_cast %7 : vector<1x128x384xbf16> to vector<128x384xbf16>
    %cst = arith.constant dense<0.000000e+00> : vector<8x384xf32>
    %9 = tpu.matmul %6, %8, %cst {dimension_numbers = #tpu.dot_dimension_numbers<[1], [0], [0], [1], [0, 0, 1, 1], [], []>} : vector<8x128xbf16>, vector<128x384xbf16>, vector<8x384xf32> -> vector<8x384xf32>
    %10 = vector.extract_strided_slice %9 {offsets = [0, 0], sizes = [8, 128], strides = [1, 1]} : vector<8x384xf32> to vector<8x128xf32>
    %11 = vector.extract_strided_slice %5 {offsets = [0, 0], sizes = [1, 128], strides = [1, 1]} : vector<16x128xf32> to vector<1x128xf32>
    %12 = vector.broadcast %11 : vector<1x128xf32> to vector<8x128xf32>
    %13 = arith.addf %10, %12 : vector<8x128xf32>
    %14 = vector.extract_strided_slice %9 {offsets = [0, 128], sizes = [8, 128], strides = [1, 1]} : vector<8x384xf32> to vector<8x128xf32>
    %15 = vector.extract_strided_slice %5 {offsets = [1, 0], sizes = [1, 128], strides = [1, 1]} : vector<16x128xf32> to vector<1x128xf32>
    %16 = vector.broadcast %15 : vector<1x128xf32> to vector<8x128xf32>
    %17 = arith.addf %14, %16 : vector<8x128xf32>
    %18 = vector.extract_strided_slice %9 {offsets = [0, 256], sizes = [8, 128], strides = [1, 1]} : vector<8x384xf32> to vector<8x128xf32>
    %19 = vector.extract_strided_slice %5 {offsets = [2, 0], sizes = [1, 128], strides = [1, 1]} : vector<16x128xf32> to vector<1x128xf32>
    %20 = vector.broadcast %19 : vector<1x128xf32> to vector<8x128xf32>
    %21 = arith.addf %18, %20 : vector<8x128xf32>
    %22 = arith.truncf %13 : vector<8x128xf32> to vector<8x128xbf16>
    %23 = vector.shape_cast %22 : vector<8x128xbf16> to vector<1x8x128xbf16>
    %24 = arith.truncf %17 : vector<8x128xf32> to vector<8x128xbf16>
    %25 = vector.shape_cast %24 : vector<8x128xbf16> to vector<1x8x128xbf16>
    %26 = arith.truncf %21 : vector<8x128xf32> to vector<8x128xbf16>
    %27 = vector.shape_cast %26 : vector<8x128xbf16> to vector<1x8x128xbf16>
    %28 = vector.extract_strided_slice %23 {offsets = [0, 0, 0], sizes = [1, 8, 32], strides = [1, 1, 1]} : vector<1x8x128xbf16> to vector<1x8x32xbf16>
    %29 = vector.extract_strided_slice %25 {offsets = [0, 0, 0], sizes = [1, 8, 32], strides = [1, 1, 1]} : vector<1x8x128xbf16> to vector<1x8x32xbf16>
    %30 = vector.extract_strided_slice %27 {offsets = [0, 0, 0], sizes = [1, 8, 32], strides = [1, 1, 1]} : vector<1x8x128xbf16> to vector<1x8x32xbf16>
    "tpu.trace_start"() <{level = 10 : i32, message = "bqd,bkd->bqk"}> : () -> ()
    %cst_8 = arith.constant dense<0.000000e+00> : vector<1x8x8xf32>
    %31 = tpu.matmul %28, %29, %cst_8 {dimension_numbers = #tpu.dot_dimension_numbers<[2], [2], [1], [1], [0, 0, 0, 1, 1, 1], [0], [0]>} : vector<1x8x32xbf16>, vector<1x8x32xbf16>, vector<1x8x8xf32> -> vector<1x8x8xf32>
    "tpu.trace_stop"() : () -> ()
    %cst_9 = arith.constant 0.353553385 : f32
    %32 = vector.broadcast %cst_9 : f32 to vector<1x8x8xf32>
    %33 = arith.mulf %31, %32 : vector<1x8x8xf32>
    %cst_10 = arith.constant dense<0xFF800000> : vector<1x8xf32>
    %34 = vector.multi_reduction <maximumf>, %33, %cst_10 [2] : vector<1x8x8xf32> to vector<1x8xf32>
    %35 = vector.shape_cast %34 : vector<1x8xf32> to vector<1x8x1xf32>
    %36 = vector.broadcast %35 : vector<1x8x1xf32> to vector<1x8x8xf32>
    %37 = arith.subf %33, %36 : vector<1x8x8xf32>
    %38 = math.exp %37 : vector<1x8x8xf32>
    %cst_11 = arith.constant dense<0.000000e+00> : vector<1x8xf32>
    %39 = vector.multi_reduction <add>, %38, %cst_11 [2] : vector<1x8x8xf32> to vector<1x8xf32>
    %40 = vector.shape_cast %39 : vector<1x8xf32> to vector<1x8x1xf32>
    %41 = tpu.reciprocal %40 {approx = true} : vector<1x8x1xf32> -> vector<1x8x1xf32>
    %42 = vector.broadcast %41 : vector<1x8x1xf32> to vector<1x8x8xf32>
    %43 = arith.mulf %38, %42 : vector<1x8x8xf32>
    %44 = arith.truncf %43 : vector<1x8x8xf32> to vector<1x8x8xbf16>
    "tpu.trace_start"() <{level = 10 : i32, message = "bqk,bkd->bqd"}> : () -> ()
    %cst_12 = arith.constant dense<0.000000e+00> : vector<1x8x32xf32>
    %45 = tpu.matmul %44, %30, %cst_12 {dimension_numbers = #tpu.dot_dimension_numbers<[2], [1], [1], [2], [0, 0, 0, 1, 1, 2], [0], [0]>} : vector<1x8x8xbf16>, vector<1x8x32xbf16>, vector<1x8x32xf32> -> vector<1x8x32xf32>
    "tpu.trace_stop"() : () -> ()
    %46 = vector.shape_cast %45 : vector<1x8x32xf32> to vector<8x32xf32>
    %47 = vector.extract_strided_slice %23 {offsets = [0, 0, 32], sizes = [1, 8, 32], strides = [1, 1, 1]} : vector<1x8x128xbf16> to vector<1x8x32xbf16>
    %48 = vector.extract_strided_slice %25 {offsets = [0, 0, 32], sizes = [1, 8, 32], strides = [1, 1, 1]} : vector<1x8x128xbf16> to vector<1x8x32xbf16>
    %49 = vector.extract_strided_slice %27 {offsets = [0, 0, 32], sizes = [1, 8, 32], strides = [1, 1, 1]} : vector<1x8x128xbf16> to vector<1x8x32xbf16>
    "tpu.trace_start"() <{level = 10 : i32, message = "bqd,bkd->bqk"}> : () -> ()
    %cst_13 = arith.constant dense<0.000000e+00> : vector<1x8x8xf32>
    %50 = tpu.matmul %47, %48, %cst_13 {dimension_numbers = #tpu.dot_dimension_numbers<[2], [2], [1], [1], [0, 0, 0, 1, 1, 1], [0], [0]>} : vector<1x8x32xbf16>, vector<1x8x32xbf16>, vector<1x8x8xf32> -> vector<1x8x8xf32>
    "tpu.trace_stop"() : () -> ()
    %cst_14 = arith.constant 0.353553385 : f32
    %51 = vector.broadcast %cst_14 : f32 to vector<1x8x8xf32>
    %52 = arith.mulf %50, %51 : vector<1x8x8xf32>
    %cst_15 = arith.constant dense<0xFF800000> : vector<1x8xf32>
    %53 = vector.multi_reduction <maximumf>, %52, %cst_15 [2] : vector<1x8x8xf32> to vector<1x8xf32>
    %54 = vector.shape_cast %53 : vector<1x8xf32> to vector<1x8x1xf32>
    %55 = vector.broadcast %54 : vector<1x8x1xf32> to vector<1x8x8xf32>
    %56 = arith.subf %52, %55 : vector<1x8x8xf32>
    %57 = math.exp %56 : vector<1x8x8xf32>
    %cst_16 = arith.constant dense<0.000000e+00> : vector<1x8xf32>
    %58 = vector.multi_reduction <add>, %57, %cst_16 [2] : vector<1x8x8xf32> to vector<1x8xf32>
    %59 = vector.shape_cast %58 : vector<1x8xf32> to vector<1x8x1xf32>
    %60 = tpu.reciprocal %59 {approx = true} : vector<1x8x1xf32> -> vector<1x8x1xf32>
    %61 = vector.broadcast %60 : vector<1x8x1xf32> to vector<1x8x8xf32>
    %62 = arith.mulf %57, %61 : vector<1x8x8xf32>
    %63 = arith.truncf %62 : vector<1x8x8xf32> to vector<1x8x8xbf16>
    "tpu.trace_start"() <{level = 10 : i32, message = "bqk,bkd->bqd"}> : () -> ()
    %cst_17 = arith.constant dense<0.000000e+00> : vector<1x8x32xf32>
    %64 = tpu.matmul %63, %49, %cst_17 {dimension_numbers = #tpu.dot_dimension_numbers<[2], [1], [1], [2], [0, 0, 0, 1, 1, 2], [0], [0]>} : vector<1x8x8xbf16>, vector<1x8x32xbf16>, vector<1x8x32xf32> -> vector<1x8x32xf32>
    "tpu.trace_stop"() : () -> ()
    %65 = vector.shape_cast %64 : vector<1x8x32xf32> to vector<8x32xf32>
    %66 = vector.extract_strided_slice %23 {offsets = [0, 0, 64], sizes = [1, 8, 32], strides = [1, 1, 1]} : vector<1x8x128xbf16> to vector<1x8x32xbf16>
    %67 = vector.extract_strided_slice %25 {offsets = [0, 0, 64], sizes = [1, 8, 32], strides = [1, 1, 1]} : vector<1x8x128xbf16> to vector<1x8x32xbf16>
    %68 = vector.extract_strided_slice %27 {offsets = [0, 0, 64], sizes = [1, 8, 32], strides = [1, 1, 1]} : vector<1x8x128xbf16> to vector<1x8x32xbf16>
    "tpu.trace_start"() <{level = 10 : i32, message = "bqd,bkd->bqk"}> : () -> ()
    %cst_18 = arith.constant dense<0.000000e+00> : vector<1x8x8xf32>
    %69 = tpu.matmul %66, %67, %cst_18 {dimension_numbers = #tpu.dot_dimension_numbers<[2], [2], [1], [1], [0, 0, 0, 1, 1, 1], [0], [0]>} : vector<1x8x32xbf16>, vector<1x8x32xbf16>, vector<1x8x8xf32> -> vector<1x8x8xf32>
    "tpu.trace_stop"() : () -> ()
    %cst_19 = arith.constant 0.353553385 : f32
    %70 = vector.broadcast %cst_19 : f32 to vector<1x8x8xf32>
    %71 = arith.mulf %69, %70 : vector<1x8x8xf32>
    %cst_20 = arith.constant dense<0xFF800000> : vector<1x8xf32>
    %72 = vector.multi_reduction <maximumf>, %71, %cst_20 [2] : vector<1x8x8xf32> to vector<1x8xf32>
    %73 = vector.shape_cast %72 : vector<1x8xf32> to vector<1x8x1xf32>
    %74 = vector.broadcast %73 : vector<1x8x1xf32> to vector<1x8x8xf32>
    %75 = arith.subf %71, %74 : vector<1x8x8xf32>
    %76 = math.exp %75 : vector<1x8x8xf32>
    %cst_21 = arith.constant dense<0.000000e+00> : vector<1x8xf32>
    %77 = vector.multi_reduction <add>, %76, %cst_21 [2] : vector<1x8x8xf32> to vector<1x8xf32>
    %78 = vector.shape_cast %77 : vector<1x8xf32> to vector<1x8x1xf32>
    %79 = tpu.reciprocal %78 {approx = true} : vector<1x8x1xf32> -> vector<1x8x1xf32>
    %80 = vector.broadcast %79 : vector<1x8x1xf32> to vector<1x8x8xf32>
    %81 = arith.mulf %76, %80 : vector<1x8x8xf32>
    %82 = arith.truncf %81 : vector<1x8x8xf32> to vector<1x8x8xbf16>
    "tpu.trace_start"() <{level = 10 : i32, message = "bqk,bkd->bqd"}> : () -> ()
    %cst_22 = arith.constant dense<0.000000e+00> : vector<1x8x32xf32>
    %83 = tpu.matmul %82, %68, %cst_22 {dimension_numbers = #tpu.dot_dimension_numbers<[2], [1], [1], [2], [0, 0, 0, 1, 1, 2], [0], [0]>} : vector<1x8x8xbf16>, vector<1x8x32xbf16>, vector<1x8x32xf32> -> vector<1x8x32xf32>
    "tpu.trace_stop"() : () -> ()
    %84 = vector.shape_cast %83 : vector<1x8x32xf32> to vector<8x32xf32>
    %85 = vector.extract_strided_slice %23 {offsets = [0, 0, 96], sizes = [1, 8, 32], strides = [1, 1, 1]} : vector<1x8x128xbf16> to vector<1x8x32xbf16>
    %86 = vector.extract_strided_slice %25 {offsets = [0, 0, 96], sizes = [1, 8, 32], strides = [1, 1, 1]} : vector<1x8x128xbf16> to vector<1x8x32xbf16>
    %87 = vector.extract_strided_slice %27 {offsets = [0, 0, 96], sizes = [1, 8, 32], strides = [1, 1, 1]} : vector<1x8x128xbf16> to vector<1x8x32xbf16>
    "tpu.trace_start"() <{level = 10 : i32, message = "bqd,bkd->bqk"}> : () -> ()
    %cst_23 = arith.constant dense<0.000000e+00> : vector<1x8x8xf32>
    %88 = tpu.matmul %85, %86, %cst_23 {dimension_numbers = #tpu.dot_dimension_numbers<[2], [2], [1], [1], [0, 0, 0, 1, 1, 1], [0], [0]>} : vector<1x8x32xbf16>, vector<1x8x32xbf16>, vector<1x8x8xf32> -> vector<1x8x8xf32>
    "tpu.trace_stop"() : () -> ()
    %cst_24 = arith.constant 0.353553385 : f32
    %89 = vector.broadcast %cst_24 : f32 to vector<1x8x8xf32>
    %90 = arith.mulf %88, %89 : vector<1x8x8xf32>
    %cst_25 = arith.constant dense<0xFF800000> : vector<1x8xf32>
    %91 = vector.multi_reduction <maximumf>, %90, %cst_25 [2] : vector<1x8x8xf32> to vector<1x8xf32>
    %92 = vector.shape_cast %91 : vector<1x8xf32> to vector<1x8x1xf32>
    %93 = vector.broadcast %92 : vector<1x8x1xf32> to vector<1x8x8xf32>
    %94 = arith.subf %90, %93 : vector<1x8x8xf32>
    %95 = math.exp %94 : vector<1x8x8xf32>
    %cst_26 = arith.constant dense<0.000000e+00> : vector<1x8xf32>
    %96 = vector.multi_reduction <add>, %95, %cst_26 [2] : vector<1x8x8xf32> to vector<1x8xf32>
    %97 = vector.shape_cast %96 : vector<1x8xf32> to vector<1x8x1xf32>
    %98 = tpu.reciprocal %97 {approx = true} : vector<1x8x1xf32> -> vector<1x8x1xf32>
    %99 = vector.broadcast %98 : vector<1x8x1xf32> to vector<1x8x8xf32>
    %100 = arith.mulf %95, %99 : vector<1x8x8xf32>
    %101 = arith.truncf %100 : vector<1x8x8xf32> to vector<1x8x8xbf16>
    "tpu.trace_start"() <{level = 10 : i32, message = "bqk,bkd->bqd"}> : () -> ()
    %cst_27 = arith.constant dense<0.000000e+00> : vector<1x8x32xf32>
    %102 = tpu.matmul %101, %87, %cst_27 {dimension_numbers = #tpu.dot_dimension_numbers<[2], [1], [1], [2], [0, 0, 0, 1, 1, 2], [0], [0]>} : vector<1x8x8xbf16>, vector<1x8x32xbf16>, vector<1x8x32xf32> -> vector<1x8x32xf32>
    "tpu.trace_stop"() : () -> ()
    %103 = vector.shape_cast %102 : vector<1x8x32xf32> to vector<8x32xf32>
    %104 = tpu.concatenate %46, %65, %84, %103 in 1 : vector<8x32xf32>, vector<8x32xf32>, vector<8x32xf32>, vector<8x32xf32> -> vector<8x128xf32>
    %105 = arith.truncf %104 : vector<8x128xf32> to vector<8x128xbf16>
    %c0_28 = arith.constant 0 : index
    %c0_29 = arith.constant 0 : index
    %c0_30 = arith.constant 0 : index
    %106 = vector.load %arg5[%c0_28, %c0_29, %c0_30] : memref<1x128x128xbf16, #tpu.memory_space<vmem>>, vector<1x128x128xbf16>
    %107 = vector.shape_cast %106 : vector<1x128x128xbf16> to vector<128x128xbf16>
    %cst_31 = arith.constant dense<0.000000e+00> : vector<8x128xf32>
    %108 = tpu.matmul %105, %107, %cst_31 {dimension_numbers = #tpu.dot_dimension_numbers<[1], [0], [0], [1], [0, 0, 1, 1], [], []>} : vector<8x128xbf16>, vector<128x128xbf16>, vector<8x128xf32> -> vector<8x128xf32>
    %109 = vector.extract_strided_slice %5 {offsets = [3, 0], sizes = [1, 128], strides = [1, 1]} : vector<16x128xf32> to vector<1x128xf32>
    %110 = vector.broadcast %109 : vector<1x128xf32> to vector<8x128xf32>
    %111 = arith.addf %108, %110 : vector<8x128xf32>
    %112 = arith.addf %3, %111 : vector<8x128xf32>
    %cst_32 = arith.constant dense<0.000000e+00> : vector<8xf32>
    %113 = vector.multi_reduction <add>, %112, %cst_32 [1] : vector<8x128xf32> to vector<8xf32>
    %114 = vector.shape_cast %113 : vector<8xf32> to vector<8x1xf32>
    %cst_33 = arith.constant 3.125000e-02 : f32
    %115 = vector.broadcast %cst_33 : f32 to vector<8x1xf32>
    %116 = arith.mulf %114, %115 : vector<8x1xf32>
    %117 = arith.mulf %112, %112 : vector<8x128xf32>
    %cst_34 = arith.constant dense<0.000000e+00> : vector<8xf32>
    %118 = vector.multi_reduction <add>, %117, %cst_34 [1] : vector<8x128xf32> to vector<8xf32>
    %119 = vector.shape_cast %118 : vector<8xf32> to vector<8x1xf32>
    %cst_35 = arith.constant 3.125000e-02 : f32
    %120 = vector.broadcast %cst_35 : f32 to vector<8x1xf32>
    %121 = arith.mulf %119, %120 : vector<8x1xf32>
    %122 = arith.mulf %116, %116 : vector<8x1xf32>
    %123 = arith.subf %121, %122 : vector<8x1xf32>
    %124 = vector.broadcast %116 : vector<8x1xf32> to vector<8x128xf32>
    %125 = arith.subf %112, %124 : vector<8x128xf32>
    %cst_36 = arith.constant 9.99999974E-6 : f32
    %126 = vector.broadcast %cst_36 : f32 to vector<8x1xf32>
    %127 = arith.addf %123, %126 : vector<8x1xf32>
    %128 = math.rsqrt %127 : vector<8x1xf32>
    %129 = vector.broadcast %128 : vector<8x1xf32> to vector<8x128xf32>
    %130 = arith.mulf %125, %129 : vector<8x128xf32>
    %131 = vector.extract_strided_slice %5 {offsets = [4, 0], sizes = [1, 128], strides = [1, 1]} : vector<16x128xf32> to vector<1x128xf32>
    %132 = vector.broadcast %131 : vector<1x128xf32> to vector<8x128xf32>
    %133 = arith.mulf %130, %132 : vector<8x128xf32>
    %134 = vector.extract_strided_slice %5 {offsets = [5, 0], sizes = [1, 128], strides = [1, 1]} : vector<16x128xf32> to vector<1x128xf32>
    %135 = vector.broadcast %134 : vector<1x128xf32> to vector<8x128xf32>
    %136 = arith.addf %133, %135 : vector<8x128xf32>
    %137 = arith.index_cast %arg1 : i32 to index
    %138 = memref.load %arg3[%137] : memref<2xf32, #tpu.memory_space<smem>>
    %139 = arith.truncf %136 : vector<8x128xf32> to vector<8x128xbf16>
    %c0_37 = arith.constant 0 : index
    %c0_38 = arith.constant 0 : index
    %c0_39 = arith.constant 0 : index
    %140 = vector.load %arg6[%c0_37, %c0_38, %c0_39] : memref<1x128x128xbf16, #tpu.memory_space<vmem>>, vector<1x128x128xbf16>
    %141 = vector.shape_cast %140 : vector<1x128x128xbf16> to vector<128x128xbf16>
    %cst_40 = arith.constant dense<0.000000e+00> : vector<8x128xf32>
    %142 = tpu.matmul %139, %141, %cst_40 {dimension_numbers = #tpu.dot_dimension_numbers<[1], [0], [0], [1], [0, 0, 1, 1], [], []>} : vector<8x128xbf16>, vector<128x128xbf16>, vector<8x128xf32> -> vector<8x128xf32>
    %143 = vector.extract_strided_slice %5 {offsets = [6, 0], sizes = [1, 128], strides = [1, 1]} : vector<16x128xf32> to vector<1x128xf32>
    %144 = vector.broadcast %143 : vector<1x128xf32> to vector<8x128xf32>
    %145 = arith.addf %142, %144 : vector<8x128xf32>
    %cst_41 = arith.constant 0.000000e+00 : f32
    %146 = vector.broadcast %cst_41 : f32 to vector<8x128xf32>
    %147 = arith.maximumf %145, %146 : vector<8x128xf32>
    %cst_42 = arith.constant 0.000000e+00 : f32
    %148 = vector.broadcast %cst_42 : f32 to vector<8x128xf32>
    %149 = arith.minimumf %145, %148 : vector<8x128xf32>
    %150 = vector.broadcast %138 : f32 to vector<8x128xf32>
    %151 = arith.mulf %150, %149 : vector<8x128xf32>
    %152 = arith.addf %147, %151 : vector<8x128xf32>
    %153 = arith.truncf %152 : vector<8x128xf32> to vector<8x128xbf16>
    %c0_43 = arith.constant 0 : index
    %c0_44 = arith.constant 0 : index
    %c0_45 = arith.constant 0 : index
    %154 = vector.load %arg7[%c0_43, %c0_44, %c0_45] : memref<1x128x128xbf16, #tpu.memory_space<vmem>>, vector<1x128x128xbf16>
    %155 = vector.shape_cast %154 : vector<1x128x128xbf16> to vector<128x128xbf16>
    %cst_46 = arith.constant dense<0.000000e+00> : vector<8x128xf32>
    %156 = tpu.matmul %153, %155, %cst_46 {dimension_numbers = #tpu.dot_dimension_numbers<[1], [0], [0], [1], [0, 0, 1, 1], [], []>} : vector<8x128xbf16>, vector<128x128xbf16>, vector<8x128xf32> -> vector<8x128xf32>
    %157 = vector.extract_strided_slice %5 {offsets = [7, 0], sizes = [1, 128], strides = [1, 1]} : vector<16x128xf32> to vector<1x128xf32>
    %158 = vector.broadcast %157 : vector<1x128xf32> to vector<8x128xf32>
    %159 = arith.addf %156, %158 : vector<8x128xf32>
    %160 = arith.addf %136, %159 : vector<8x128xf32>
    %cst_47 = arith.constant dense<0.000000e+00> : vector<8xf32>
    %161 = vector.multi_reduction <add>, %160, %cst_47 [1] : vector<8x128xf32> to vector<8xf32>
    %162 = vector.shape_cast %161 : vector<8xf32> to vector<8x1xf32>
    %cst_48 = arith.constant 3.125000e-02 : f32
    %163 = vector.broadcast %cst_48 : f32 to vector<8x1xf32>
    %164 = arith.mulf %162, %163 : vector<8x1xf32>
    %165 = arith.mulf %160, %160 : vector<8x128xf32>
    %cst_49 = arith.constant dense<0.000000e+00> : vector<8xf32>
    %166 = vector.multi_reduction <add>, %165, %cst_49 [1] : vector<8x128xf32> to vector<8xf32>
    %167 = vector.shape_cast %166 : vector<8xf32> to vector<8x1xf32>
    %cst_50 = arith.constant 3.125000e-02 : f32
    %168 = vector.broadcast %cst_50 : f32 to vector<8x1xf32>
    %169 = arith.mulf %167, %168 : vector<8x1xf32>
    %170 = arith.mulf %164, %164 : vector<8x1xf32>
    %171 = arith.subf %169, %170 : vector<8x1xf32>
    %172 = vector.broadcast %164 : vector<8x1xf32> to vector<8x128xf32>
    %173 = arith.subf %160, %172 : vector<8x128xf32>
    %cst_51 = arith.constant 9.99999974E-6 : f32
    %174 = vector.broadcast %cst_51 : f32 to vector<8x1xf32>
    %175 = arith.addf %171, %174 : vector<8x1xf32>
    %176 = math.rsqrt %175 : vector<8x1xf32>
    %177 = vector.broadcast %176 : vector<8x1xf32> to vector<8x128xf32>
    %178 = arith.mulf %173, %177 : vector<8x128xf32>
    %179 = vector.extract_strided_slice %5 {offsets = [8, 0], sizes = [1, 128], strides = [1, 1]} : vector<16x128xf32> to vector<1x128xf32>
    %180 = vector.broadcast %179 : vector<1x128xf32> to vector<8x128xf32>
    %181 = arith.mulf %178, %180 : vector<8x128xf32>
    %182 = vector.extract_strided_slice %5 {offsets = [9, 0], sizes = [1, 128], strides = [1, 1]} : vector<16x128xf32> to vector<1x128xf32>
    %183 = vector.broadcast %182 : vector<1x128xf32> to vector<8x128xf32>
    %184 = arith.addf %181, %183 : vector<8x128xf32>
    %c0_52 = arith.constant 0 : index
    %c0_53 = arith.constant 0 : index
    %185 = vector.load %arg9[%c0_52, %c0_53] : memref<8x128xf32, #tpu.memory_space<vmem>>, vector<8x128xf32>
    tpu.vector_store %arg9[%c0_52, %c0_53], %184 {strides = array<i32>} : memref<8x128xf32, #tpu.memory_space<vmem>>, vector<8x128xf32>,
    return
  }
  func.func @transform_0(%arg0: i32, %arg1: i32) -> (i32, i32) {
    %c0_i32 = arith.constant 0 : i32
    %c0_i32_0 = arith.constant 0 : i32
    return %arg0, %c0_i32 : i32, i32
  }
  func.func @transform_1(%arg0: i32, %arg1: i32) -> i32 {
    %c0_i32 = arith.constant 0 : i32
    %c0_i32_0 = arith.constant 0 : i32
    return %c0_i32 : i32
  }
  func.func @transform_2(%arg0: i32, %arg1: i32) -> (i32, i32, i32) {
    %c0_i32 = arith.constant 0 : i32
    %c0_i32_0 = arith.constant 0 : i32
    %c0_i32_1 = arith.constant 0 : i32
    return %arg1, %c0_i32, %c0_i32_0 : i32, i32, i32
  }
  func.func @transform_3(%arg0: i32, %arg1: i32) -> (i32, i32, i32) {
    %c0_i32 = arith.constant 0 : i32
    %c0_i32_0 = arith.constant 0 : i32
    %c0_i32_1 = arith.constant 0 : i32
    return %arg1, %c0_i32, %c0_i32_0 : i32, i32, i32
  }
  func.func @transform_4(%arg0: i32, %arg1: i32) -> (i32, i32, i32) {
    %c0_i32 = arith.constant 0 : i32
    %c0_i32_0 = arith.constant 0 : i32
    %c0_i32_1 = arith.constant 0 : i32
    return %arg1, %c0_i32, %c0_i32_0 : i32, i32, i32
  }
  func.func @transform_5(%arg0: i32, %arg1: i32) -> (i32, i32, i32) {
    %c0_i32 = arith.constant 0 : i32
    %c0_i32_0 = arith.constant 0 : i32
    %c0_i32_1 = arith.constant 0 : i32
    return %arg1, %c0_i32, %c0_i32_0 : i32, i32, i32
  }
  func.func @transform_6(%arg0: i32, %arg1: i32) -> (i32, i32, i32) {
    %c0_i32 = arith.constant 0 : i32
    %c0_i32_0 = arith.constant 0 : i32
    %c0_i32_1 = arith.constant 0 : i32
    return %arg1, %c0_i32, %c0_i32_0 : i32, i32, i32
  }
  func.func @transform_7(%arg0: i32, %arg1: i32) -> (i32, i32) {
    %c0_i32 = arith.constant 0 : i32
    %c0_i32_0 = arith.constant 0 : i32
    return %arg0, %c0_i32 : i32, i32
  }
}

</mosaic_0001>

<llo_original>
// kernel: tpu_custom_call.1
$region0: #{tpu_custom_call.1}
  #allocation0 [shape = 'u32[]', space=smem, size = 0x4, offset = 0x4, fixed_abs, tag = 'smem constant byte address 0x4 - core index']
  #allocation1 [shape = 'u32[144,128]{1,0:T(1,128)}', space=vmem, size = 0x12000, scoped, tag = 'internal scratch']
  %s0 = inlined_call_operand.hbm [shape: f32[16,128], index: 0, kind: input, shape index: {}, may-alias: {0,7}]
  %s1 = inlined_call_operand.vmem [shape: f32[2], index: 1, kind: input, shape index: {}]
  %s2 = inlined_call_operand.hbm [shape: bf16[2,128,384], index: 2, kind: input, shape index: {}]
  %s3 = inlined_call_operand.hbm [shape: bf16[2,128,128], index: 3, kind: input, shape index: {}]
  %s4 = inlined_call_operand.hbm [shape: bf16[2,128,128], index: 4, kind: input, shape index: {}]
  %s5 = inlined_call_operand.hbm [shape: bf16[2,128,128], index: 5, kind: input, shape index: {}]
  %s6 = inlined_call_operand.vmem [shape: f32[2,16,128], index: 6, kind: input, shape index: {}]
  %s7 = inlined_call_operand.hbm [shape: f32[16,128], index: 7, kind: output, shape index: {}, may-alias: {0,7}]
  %s8 = sld [smem:[#allocation0]]
  $region89: #{tpu_custom_call.1} parent=0
    _
  %s10 = ssub.s32 1, %s8
  %s11 = scalar_select 0, %s10, %s8
  $region1: #{tpu_custom_call.1} parent=0
    #allocation2 [shape = 'u8[8192]{0}', space=vmem, size = 0x2000, scoped, tag = 'input window, operand 0']
    #allocation3 [shape = 's32[2]{0}', space=sflag, size = 0x8, scoped, tag = 'scoped memory for tpu_custom_call.1']
    #allocation4 [shape = 's32[2]{0}', space=sflag, size = 0x8, scoped, tag = 'scoped memory for tpu_custom_call.1']
    #allocation5 [shape = 's32[2]{0}', space=sflag, size = 0x8, scoped, tag = 'scoped memory for tpu_custom_call.1']
    #allocation6 [shape = 'u8[512]{0}', space=smem, size = 0x200, scoped, tag = 'input window, operand 1, single buffered']
    #allocation7 [shape = 'u8[196608]{0}', space=vmem, size = 0x30000, scoped, tag = 'input window, operand 2']
    #allocation8 [shape = 's32[2]{0}', space=sflag, size = 0x8, scoped, tag = 'scoped memory for tpu_custom_call.1']
    #allocation9 [shape = 'u8[65536]{0}', space=vmem, size = 0x10000, scoped, tag = 'input window, operand 3']
    #allocation10 [shape = 'u8[65536]{0}', space=vmem, size = 0x10000, scoped, tag = 'input window, operand 4']
    #allocation11 [shape = 's32[2]{0}', space=sflag, size = 0x8, scoped, tag = 'scoped memory for tpu_custom_call.1']
    #allocation12 [shape = 'u8[65536]{0}', space=vmem, size = 0x10000, scoped, tag = 'input window, operand 5']
    #allocation13 [shape = 'u8[8192]{0}', space=vmem, size = 0x2000, scoped, tag = 'output window, operand 0']
    %12 = vsyncpa [#allocation3], 0
    %s13 = scalar_lea.sflag [#allocation3], 1
    %14 = vsyncpa %s13, 0
    %15 = vsyncpa [#allocation5], 0
    %16 = vsyncpa [#allocation8], 0
    %s17 = scalar_lea.sflag [#allocation8], 1
    %18 = vsyncpa %s17, 0
    %19 = vsyncpa [#allocation11], 0
    %s20 = scalar_lea.sflag [#allocation11], 1
    %21 = vsyncpa %s20, 0
    %22 = vsyncpa [#allocation4], 0
    %s23 = scalar_lea.sflag [#allocation4], 1
    %24 = vsyncpa %s23, 0
    loop: start=0, step=1, limit=6
    $region2: #{tpu_custom_call.1} parent=1 // loop_pre_header
      _
    $region3: #{tpu_custom_call.1} parent=1 // loop_header
      %s26 = sphi 0, %s30
      %p27 = scmp.ge.s32.totalorder %s26, 6
      %s33 = sphi 0, %s45
      %s34 = sphi 0, %s41
      %s35 = sphi 0, %s33
      %s36 = sphi 0, %s34
      %s37 = sphi 0, %s35
      %s38 = sphi 0, %s36
      %s48 = sphi 0, %s50
      %s51 = sphi 0, %s48
      %s52 = sphi 0, %s51
      %s68 = sphi 0, %s52
      %s72 = sphi 0, %s72
      %s74 = sphi 0, %s72
      %s75 = sphi 0, %s74
      %s89 = sphi 0, %s75
      %s95 = sphi 0, %s97
      %s98 = sphi 0, %s95
      %s99 = sphi 0, %s98
      %s115 = sphi 0, %s99
      %s121 = sphi 0, %s123
      %s124 = sphi 0, %s121
      %s125 = sphi 0, %s124
      %s141 = sphi 0, %s125
      %s147 = sphi 0, %s149
      %s150 = sphi 0, %s147
      %s151 = sphi 0, %s150
      %s167 = sphi 0, %s151
      %s173 = sphi 0, %s175
      %s176 = sphi 0, %s173
      %s177 = sphi 0, %s176
      %s193 = sphi 0, %s177
      %s199 = sphi 0, %s201
      %s202 = sphi 0, %s199
      %s203 = sphi 0, %s202
      %s219 = sphi 0, %s203
      %s225 = sphi 0, %s227
      %s228 = sphi 0, %s225
      %s229 = sphi 0, %s228
      %s245 = sphi 0, %s229
    $region4: #{tpu_custom_call.1} parent=1 // loop_header_branch
      %29 = sbr.rel (%p27) target = $region8
    $region5: #{tpu_custom_call.1} parent=1 // loop_body
      %s31 = ssub.s32 %s26, 1
      %s32 = ssub.s32 %s26, 2
      %s39 = sadd.s32 1, %s34
      %p40 = scmp.ge.s32.totalorder %s39, 2
      %s41 = scalar_select %p40, 0, %s39
      %s42 = sadd.s32 1, %s33
      %s43 = scalar_select %p40, %s42, %s33
      %p44 = scmp.ge.s32.totalorder %s43, 2
      %s45 = scalar_select %p44, 0, %s43
      %s46 = ssub.s32 %s33, %s45
      %p47 = scmp.eq.s32.totalorder %s46, 0
      %s49 = sadd.s32 %s48, 1
      %s50 = scalar_select %p47, %s48, %s49
      %p53 = pneg %p47
      %p54 = scmp.eq.s32.totalorder %s26, 3
      %p55 = por %p53, %p54
      %p56 = scmp.ne.s32.totalorder %s48, %s51
      %p57 = scmp.eq.s32.totalorder %s26, 0
      %p58 = por %p56, %p57
      %p59 = scmp.ne.s32.totalorder %s48, %s51
      %p60 = scmp.eq.s32.totalorder %s31, 3
      %p61 = por %p59, %p60
      %p62 = scmp.ne.s32.totalorder %s51, %s52
      %p63 = scmp.eq.s32.totalorder %s31, 0
      %p64 = por %p62, %p63
      %p65 = scmp.ne.s32.totalorder %s51, %s52
      %p66 = scmp.eq.s32.totalorder %s32, 3
      %p67 = por %p65, %p66
      %p69 = scmp.ne.s32.totalorder %s52, %s68
      %p70 = scmp.eq.s32.totalorder %s32, 0
      %p71 = por %p69, %p70
      %s73 = sadd.s32 %s72, 1
      %p76 = scmp.eq.s32.totalorder %s26, 3
      %p77 = scmp.ne.s32.totalorder %s72, %s74
      %p78 = scmp.eq.s32.totalorder %s26, 0
      %p79 = por %p77, %p78
      %p80 = scmp.ne.s32.totalorder %s72, %s74
      %p81 = scmp.eq.s32.totalorder %s31, 3
      %p82 = por %p80, %p81
      %p83 = scmp.ne.s32.totalorder %s74, %s75
      %p84 = scmp.eq.s32.totalorder %s31, 0
      %p85 = por %p83, %p84
      %p86 = scmp.ne.s32.totalorder %s74, %s75
      %p87 = scmp.eq.s32.totalorder %s32, 3
      %p88 = por %p86, %p87
      %p90 = scmp.ne.s32.totalorder %s75, %s89
      %p91 = scmp.eq.s32.totalorder %s32, 0
      %p92 = por %p90, %p91
      %s93 = ssub.s32 %s34, %s41
      %p94 = scmp.eq.s32.totalorder %s93, 0
      %s96 = sadd.s32 %s95, 1
      %s97 = scalar_select %p94, %s95, %s96
      %p100 = pneg %p94
      %p101 = scmp.eq.s32.totalorder %s26, 3
      %p102 = por %p100, %p101
      %p103 = scmp.ne.s32.totalorder %s95, %s98
      %p104 = scmp.eq.s32.totalorder %s26, 0
      %p105 = por %p103, %p104
      %p106 = scmp.ne.s32.totalorder %s95, %s98
      %p107 = scmp.eq.s32.totalorder %s31, 3
      %p108 = por %p106, %p107
      %p109 = scmp.ne.s32.totalorder %s98, %s99
      %p110 = scmp.eq.s32.totalorder %s31, 0
      %p111 = por %p109, %p110
      %p112 = scmp.ne.s32.totalorder %s98, %s99
      %p113 = scmp.eq.s32.totalorder %s32, 3
      %p114 = por %p112, %p113
      %p116 = scmp.ne.s32.totalorder %s99, %s115
      %p117 = scmp.eq.s32.totalorder %s32, 0
      %p118 = por %p116, %p117
      %s119 = ssub.s32 %s34, %s41
      %p120 = scmp.eq.s32.totalorder %s119, 0
      %s122 = sadd.s32 %s121, 1
      %s123 = scalar_select %p120, %s121, %s122
      %p126 = pneg %p120
      %p127 = scmp.eq.s32.totalorder %s26, 3
      %p128 = por %p126, %p127
      %p129 = scmp.ne.s32.totalorder %s121, %s124
      %p130 = scmp.eq.s32.totalorder %s26, 0
      %p131 = por %p129, %p130
      %p132 = scmp.ne.s32.totalorder %s121, %s124
      %p133 = scmp.eq.s32.totalorder %s31, 3
      %p134 = por %p132, %p133
      %p135 = scmp.ne.s32.totalorder %s124, %s125
      %p136 = scmp.eq.s32.totalorder %s31, 0
      %p137 = por %p135, %p136
      %p138 = scmp.ne.s32.totalorder %s124, %s125
      %p139 = scmp.eq.s32.totalorder %s32, 3
      %p140 = por %p138, %p139
      %p142 = scmp.ne.s32.totalorder %s125, %s141
      %p143 = scmp.eq.s32.totalorder %s32, 0
      %p144 = por %p142, %p143
      %s145 = ssub.s32 %s34, %s41
      %p146 = scmp.eq.s32.totalorder %s145, 0
      %s148 = sadd.s32 %s147, 1
      %s149 = scalar_select %p146, %s147, %s148
      %p152 = pneg %p146
      %p153 = scmp.eq.s32.totalorder %s26, 3
      %p154 = por %p152, %p153
      %p155 = scmp.ne.s32.totalorder %s147, %s150
      %p156 = scmp.eq.s32.totalorder %s26, 0
      %p157 = por %p155, %p156
      %p158 = scmp.ne.s32.totalorder %s147, %s150
      %p159 = scmp.eq.s32.totalorder %s31, 3
      %p160 = por %p158, %p159
      %p161 = scmp.ne.s32.totalorder %s150, %s151
      %p162 = scmp.eq.s32.totalorder %s31, 0
      %p163 = por %p161, %p162
      %p164 = scmp.ne.s32.totalorder %s150, %s151
      %p165 = scmp.eq.s32.totalorder %s32, 3
      %p166 = por %p164, %p165
      %p168 = scmp.ne.s32.totalorder %s151, %s167
      %p169 = scmp.eq.s32.totalorder %s32, 0
      %p170 = por %p168, %p169
      %s171 = ssub.s32 %s34, %s41
      %p172 = scmp.eq.s32.totalorder %s171, 0
      %s174 = sadd.s32 %s173, 1
      %s175 = scalar_select %p172, %s173, %s174
      %p178 = pneg %p172
      %p179 = scmp.eq.s32.totalorder %s26, 3
      %p180 = por %p178, %p179
      %p181 = scmp.ne.s32.totalorder %s173, %s176
      %p182 = scmp.eq.s32.totalorder %s26, 0
      %p183 = por %p181, %p182
      %p184 = scmp.ne.s32.totalorder %s173, %s176
      %p185 = scmp.eq.s32.totalorder %s31, 3
      %p186 = por %p184, %p185
      %p187 = scmp.ne.s32.totalorder %s176, %s177
      %p188 = scmp.eq.s32.totalorder %s31, 0
      %p189 = por %p187, %p188
      %p190 = scmp.ne.s32.totalorder %s176, %s177
      %p191 = scmp.eq.s32.totalorder %s32, 3
      %p192 = por %p190, %p191
      %p194 = scmp.ne.s32.totalorder %s177, %s193
      %p195 = scmp.eq.s32.totalorder %s32, 0
      %p196 = por %p194, %p195
      %s197 = ssub.s32 %s34, %s41
      %p198 = scmp.eq.s32.totalorder %s197, 0
      %s200 = sadd.s32 %s199, 1
      %s201 = scalar_select %p198, %s199, %s200
      %p204 = pneg %p198
      %p205 = scmp.eq.s32.totalorder %s26, 3
      %p206 = por %p204, %p205
      %p207 = scmp.ne.s32.totalorder %s199, %s202
      %p208 = scmp.eq.s32.totalorder %s26, 0
      %p209 = por %p207, %p208
      %p210 = scmp.ne.s32.totalorder %s199, %s202
      %p211 = scmp.eq.s32.totalorder %s31, 3
      %p212 = por %p210, %p211
      %p213 = scmp.ne.s32.totalorder %s202, %s203
      %p214 = scmp.eq.s32.totalorder %s31, 0
      %p215 = por %p213, %p214
      %p216 = scmp.ne.s32.totalorder %s202, %s203
      %p217 = scmp.eq.s32.totalorder %s32, 3
      %p218 = por %p216, %p217
      %p220 = scmp.ne.s32.totalorder %s203, %s219
      %p221 = scmp.eq.s32.totalorder %s32, 0
      %p222 = por %p220, %p221
      %s223 = ssub.s32 %s33, %s45
      %p224 = scmp.eq.s32.totalorder %s223, 0
      %s226 = sadd.s32 %s225, 1
      %s227 = scalar_select %p224, %s225, %s226
      %p230 = pneg %p224
      %p231 = scmp.eq.s32.totalorder %s26, 3
      %p232 = por %p230, %p231
      %p233 = scmp.ne.s32.totalorder %s225, %s228
      %p234 = scmp.eq.s32.totalorder %s26, 0
      %p235 = por %p233, %p234
      %p236 = scmp.ne.s32.totalorder %s225, %s228
      %p237 = scmp.eq.s32.totalorder %s31, 3
      %p238 = por %p236, %p237
      %p239 = scmp.ne.s32.totalorder %s228, %s229
      %p240 = scmp.eq.s32.totalorder %s31, 0
      %p241 = por %p239, %p240
      %p242 = scmp.ne.s32.totalorder %s228, %s229
      %p243 = scmp.eq.s32.totalorder %s32, 3
      %p244 = por %p242, %p243
      %p246 = scmp.ne.s32.totalorder %s229, %s245
      %p247 = scmp.eq.s32.totalorder %s32, 0
      %p248 = por %p246, %p247
      %p249 = scmp.le.s32.totalorder 1, %s26
      %p250 = scmp.lt.s32.totalorder %s26, 5
      %p251 = pnand %p249, %p250
      %p252 = pneg %p251
      // Predicated region
      $region9: #{tpu_custom_call.1} parent=5 // pred_check
        _
      $region10: #{tpu_custom_call.1} parent=5 // pred_check_branch
        %254 = sbr.rel (%p251) target = $region12
      $region11: #{tpu_custom_call.1} parent=5 // pred_region
        %s255 = ssub.s32 %s26, 1
        // Predicated region
        $region13: #{tpu_custom_call.1} parent=11 // pred_check
          %p256 = pneg %p85
        $region14: #{tpu_custom_call.1} parent=11 // pred_check_branch
          %258 = sbr.rel (%p256) target = $region16
        $region15: #{tpu_custom_call.1} parent=11 // pred_region
          %s260 = ssub.s32 16, 16
          %261 = vsyncadd [#allocation5], %s260
          %s263 = sshll.u32 %s1, 4
          %s264 = int_to_ptr.vmem [resolvable:$true] %s263
          %266 = dma.vmem_to_smem %s264, 16, [#allocation6], [#allocation5]
        $region16: #{tpu_custom_call.1} parent=11 // pred_fallthru
          _
      $region12: #{tpu_custom_call.1} parent=5 // pred_fallthru
        _
      %p267 = scmp.lt.s32.totalorder %s26, 4
      // Predicated region
      $region17: #{tpu_custom_call.1} parent=5 // pred_check
        %p268 = pneg %p267
      $region18: #{tpu_custom_call.1} parent=5 // pred_check_branch
        %270 = sbr.rel (%p268) target = $region20
      $region19: #{tpu_custom_call.1} parent=5 // pred_region
        // Predicated region
        $region21: #{tpu_custom_call.1} parent=19 // pred_check
          %p271 = pneg %p58
        $region22: #{tpu_custom_call.1} parent=19 // pred_check_branch
          %273 = sbr.rel (%p271) target = $region24
        $region23: #{tpu_custom_call.1} parent=19 // pred_region
          %s274 = sand.u32 %s48, 1
          %s275 = scalar_lea.sflag [#allocation3], %s274
          %s276 = sand.u32 %s48, 1
          %s277 = smul.addr %s276, 8
          %s278 = scalar_lea.vmem [#allocation2], %s277
          %s280 = ssub.s32 128, 128
          %281 = vsyncadd %s275, %s280
          %s282 = smul.addr %s33, 128
          %s283 = scalar_lea.hbm %s0, %s282
          %s285 = sshll.u32 %s278, 4
          %s286 = int_to_ptr.vmem [resolvable:$true] %s285
          %288 = dma.hbm_to_vmem [thread:$0]  %s283, 128, %s286, %s275
        $region24: #{tpu_custom_call.1} parent=19 // pred_fallthru
          _
        // Predicated region
        $region25: #{tpu_custom_call.1} parent=19 // pred_check
          %p289 = pneg %p105
        $region26: #{tpu_custom_call.1} parent=19 // pred_check_branch
          %291 = sbr.rel (%p289) target = $region28
        $region27: #{tpu_custom_call.1} parent=19 // pred_region
          %s292 = sand.u32 %s26, 1
          %s293 = scalar_lea.sflag [#allocation8], %s292
          %s294 = sand.u32 %s95, 1
          %s295 = smul.addr %s294, 192
          %s296 = scalar_lea.vmem [#allocation7], %s295
          %s298 = ssub.s32 3072, 3072
          %299 = vsyncadd %s293, %s298
          %s300 = smul.addr %s34, 48
          %s301 = smul.addr %s300, 64
          %s302 = scalar_lea.hbm %s2, %s301
          %s303 = sshll.u32 %s296, 4
          %s304 = int_to_ptr.vmem [resolvable:$true] %s303
          %309 = dma.hbm_to_vmem [thread:$0]  %s302, 3072, %s304, %s293, 192, 192, 12
        $region28: #{tpu_custom_call.1} parent=19 // pred_fallthru
          _
        // Predicated region
        $region29: #{tpu_custom_call.1} parent=19 // pred_check
          %p310 = pneg %p131
        $region30: #{tpu_custom_call.1} parent=19 // pred_check_branch
          %312 = sbr.rel (%p310) target = $region32
        $region31: #{tpu_custom_call.1} parent=19 // pred_region
          %s313 = sand.u32 %s26, 1
          %s314 = scalar_lea.sflag [#allocation8], %s313
          %s315 = sand.u32 %s121, 1
          %s316 = smul.addr %s315, 64
          %s317 = scalar_lea.vmem [#allocation9], %s316
          %s319 = ssub.s32 1024, 1024
          %320 = vsyncadd %s314, %s319
          %s321 = smul.addr %s34, 16
          %s322 = smul.addr %s321, 64
          %s323 = scalar_lea.hbm %s3, %s322
          %s324 = sshll.u32 %s317, 4
          %s325 = int_to_ptr.vmem [resolvable:$true] %s324
          %330 = dma.hbm_to_vmem [thread:$0]  %s323, 1024, %s325, %s314, 64, 64, 4
        $region32: #{tpu_custom_call.1} parent=19 // pred_fallthru
          _
        // Predicated region
        $region33: #{tpu_custom_call.1} parent=19 // pred_check
          %p331 = pneg %p157
        $region34: #{tpu_custom_call.1} parent=19 // pred_check_branch
          %333 = sbr.rel (%p331) target = $region36
        $region35: #{tpu_custom_call.1} parent=19 // pred_region
          %s334 = sand.u32 %s26, 1
          %s335 = scalar_lea.sflag [#allocation11], %s334
          %s336 = sand.u32 %s147, 1
          %s337 = smul.addr %s336, 64
          %s338 = scalar_lea.vmem [#allocation10], %s337
          %s340 = ssub.s32 1024, 1024
          %341 = vsyncadd %s335, %s340
          %s342 = smul.addr %s34, 16
          %s343 = smul.addr %s342, 64
          %s344 = scalar_lea.hbm %s4, %s343
          %s345 = sshll.u32 %s338, 4
          %s346 = int_to_ptr.vmem [resolvable:$true] %s345
          %351 = dma.hbm_to_vmem [thread:$0]  %s344, 1024, %s346, %s335, 64, 64, 4
        $region36: #{tpu_custom_call.1} parent=19 // pred_fallthru
          _
        // Predicated region
        $region37: #{tpu_custom_call.1} parent=19 // pred_check
          %p352 = pneg %p183
        $region38: #{tpu_custom_call.1} parent=19 // pred_check_branch
          %354 = sbr.rel (%p352) target = $region40
        $region39: #{tpu_custom_call.1} parent=19 // pred_region
          %s355 = sand.u32 %s26, 1
          %s356 = scalar_lea.sflag [#allocation11], %s355
          %s357 = sand.u32 %s173, 1
          %s358 = smul.addr %s357, 64
          %s359 = scalar_lea.vmem [#allocation12], %s358
          %s361 = ssub.s32 1024, 1024
          %362 = vsyncadd %s356, %s361
          %s363 = smul.addr %s34, 16
          %s364 = smul.addr %s363, 64
          %s365 = scalar_lea.hbm %s5, %s364
          %s366 = sshll.u32 %s359, 4
          %s367 = int_to_ptr.vmem [resolvable:$true] %s366
          %372 = dma.hbm_to_vmem [thread:$0]  %s365, 1024, %s367, %s356, 64, 64, 4
        $region40: #{tpu_custom_call.1} parent=19 // pred_fallthru
          _
        // Predicated region
        $region41: #{tpu_custom_call.1} parent=19 // pred_check
          %p373 = pneg %p209
        $region42: #{tpu_custom_call.1} parent=19 // pred_check_branch
          %375 = sbr.rel (%p373) target = $region44
        $region43: #{tpu_custom_call.1} parent=19 // pred_region
          %p376 = scmp.lt.s32.totalorder %s34, 1
          %s377 = scalar_select %p376, %s34, 1
          %s378 = smul.addr %s377, 2
          %s379 = smul.addr %s378, 8
          %s380 = scalar_lea.vmem %s6, %s379
        $region44: #{tpu_custom_call.1} parent=19 // pred_fallthru
          _
      $region20: #{tpu_custom_call.1} parent=5 // pred_fallthru
        _
      %p381 = scmp.le.s32.totalorder 1, %s26
      %p382 = scmp.lt.s32.totalorder %s26, 5
      %p383 = pnand %p381, %p382
      %p384 = pneg %p383
      // Predicated region
      $region45: #{tpu_custom_call.1} parent=5 // pred_check
        _
      $region46: #{tpu_custom_call.1} parent=5 // pred_check_branch
        %386 = sbr.rel (%p383) target = $region48
      $region47: #{tpu_custom_call.1} parent=5 // pred_region
        %s387 = ssub.s32 %s26, 1
        %s388 = sand.u32 %s51, 1
        %s389 = scalar_lea.sflag [#allocation3], %s388
        %s390 = sand.u32 %s51, 1
        %s391 = smul.addr %s390, 8
        %s392 = scalar_lea.vmem [#allocation2], %s391
        // Predicated region
        $region49: #{tpu_custom_call.1} parent=47 // pred_check
          %p393 = pneg %p64
        $region50: #{tpu_custom_call.1} parent=47 // pred_check_branch
          %395 = sbr.rel (%p393) target = $region52
        $region51: #{tpu_custom_call.1} parent=47 // pred_region
          %396 = dma.done %s389, 128
        $region52: #{tpu_custom_call.1} parent=47 // pred_fallthru
          _
        // Predicated region
        $region53: #{tpu_custom_call.1} parent=47 // pred_check
          %p397 = pneg %p85
        $region54: #{tpu_custom_call.1} parent=47 // pred_check_branch
          %399 = sbr.rel (%p397) target = $region56
        $region55: #{tpu_custom_call.1} parent=47 // pred_region
          %400 = dma.done [#allocation5], 16
        $region56: #{tpu_custom_call.1} parent=47 // pred_fallthru
          _
        %s401 = sand.u32 %s31, 1
        %s402 = scalar_lea.sflag [#allocation8], %s401
        %s403 = sand.u32 %s98, 1
        %s404 = smul.addr %s403, 192
        %s405 = scalar_lea.vmem [#allocation7], %s404
        // Predicated region
        $region57: #{tpu_custom_call.1} parent=47 // pred_check
          %p406 = pneg %p111
        $region58: #{tpu_custom_call.1} parent=47 // pred_check_branch
          %408 = sbr.rel (%p406) target = $region60
        $region59: #{tpu_custom_call.1} parent=47 // pred_region
          %409 = dma.done %s402, 3072
        $region60: #{tpu_custom_call.1} parent=47 // pred_fallthru
          _
        %s410 = sand.u32 %s31, 1
        %s411 = scalar_lea.sflag [#allocation8], %s410
        %s412 = sand.u32 %s124, 1
        %s413 = smul.addr %s412, 64
        %s414 = scalar_lea.vmem [#allocation9], %s413
        // Predicated region
        $region61: #{tpu_custom_call.1} parent=47 // pred_check
          %p415 = pneg %p137
        $region62: #{tpu_custom_call.1} parent=47 // pred_check_branch
          %417 = sbr.rel (%p415) target = $region64
        $region63: #{tpu_custom_call.1} parent=47 // pred_region
          %418 = dma.done %s411, 1024
        $region64: #{tpu_custom_call.1} parent=47 // pred_fallthru
          _
        %s419 = sand.u32 %s31, 1
        %s420 = scalar_lea.sflag [#allocation11], %s419
        %s421 = sand.u32 %s150, 1
        %s422 = smul.addr %s421, 64
        %s423 = scalar_lea.vmem [#allocation10], %s422
        // Predicated region
        $region65: #{tpu_custom_call.1} parent=47 // pred_check
          %p424 = pneg %p163
        $region66: #{tpu_custom_call.1} parent=47 // pred_check_branch
          %426 = sbr.rel (%p424) target = $region68
        $region67: #{tpu_custom_call.1} parent=47 // pred_region
          %427 = dma.done %s420, 1024
        $region68: #{tpu_custom_call.1} parent=47 // pred_fallthru
          _
        %s428 = sand.u32 %s31, 1
        %s429 = scalar_lea.sflag [#allocation11], %s428
        %s430 = sand.u32 %s176, 1
        %s431 = smul.addr %s430, 64
        %s432 = scalar_lea.vmem [#allocation12], %s431
        // Predicated region
        $region69: #{tpu_custom_call.1} parent=47 // pred_check
          %p433 = pneg %p189
        $region70: #{tpu_custom_call.1} parent=47 // pred_check_branch
          %435 = sbr.rel (%p433) target = $region72
        $region71: #{tpu_custom_call.1} parent=47 // pred_region
          %436 = dma.done %s429, 1024
        $region72: #{tpu_custom_call.1} parent=47 // pred_fallthru
          _
        %437 = sfence
        %s438 = sand.u32 %s51, 1
        %s439 = scalar_lea.sflag [#allocation3], %s438
        %s440 = sand.u32 %s51, 1
        %s441 = smul.addr %s440, 8
        %s442 = scalar_lea.vmem [#allocation2], %s441
        %p443 = pneg %p64
        %p444 = pneg %p61
        %p445 = pneg %p85
        %p446 = pneg %p82
        %s447 = sand.u32 %s31, 1
        %s448 = scalar_lea.sflag [#allocation8], %s447
        %s449 = sand.u32 %s98, 1
        %s450 = smul.addr %s449, 192
        %s451 = scalar_lea.vmem [#allocation7], %s450
        %p452 = pneg %p111
        %p453 = pneg %p108
        %s454 = sand.u32 %s31, 1
        %s455 = scalar_lea.sflag [#allocation8], %s454
        %s456 = sand.u32 %s124, 1
        %s457 = smul.addr %s456, 64
        %s458 = scalar_lea.vmem [#allocation9], %s457
        %p459 = pneg %p137
        %p460 = pneg %p134
        %s461 = sand.u32 %s31, 1
        %s462 = scalar_lea.sflag [#allocation11], %s461
        %s463 = sand.u32 %s150, 1
        %s464 = smul.addr %s463, 64
        %s465 = scalar_lea.vmem [#allocation10], %s464
        %p466 = pneg %p163
        %p467 = pneg %p160
        %s468 = sand.u32 %s31, 1
        %s469 = scalar_lea.sflag [#allocation11], %s468
        %s470 = sand.u32 %s176, 1
        %s471 = smul.addr %s470, 64
        %s472 = scalar_lea.vmem [#allocation12], %s471
        %p473 = pneg %p189
        %p474 = pneg %p186
        %p475 = scmp.lt.s32.totalorder %s36, 1
        %s476 = scalar_select %p475, %s36, 1
        %s477 = smul.addr %s476, 2
        %s478 = smul.addr %s477, 8
        %s479 = scalar_lea.vmem %s6, %s478
        %p480 = pneg %p215
        %p481 = pneg %p212
        %p482 = pneg %p241
        %p483 = pneg %p238
        %s484 = sand.u32 %s228, 1
        %s485 = scalar_lea.sflag [#allocation4], %s484
        %s486 = sand.u32 %s228, 1
        %s487 = smul.addr %s486, 8
        %s488 = scalar_lea.vmem [#allocation13], %s487
        %p489 = scmp.lt.s32.totalorder %s36, 1
        %s490 = scalar_select %p489, %s36, 1
        %s491 = smul.addr %s490, 2
        %s492 = smul.addr %s491, 8
        %s493 = scalar_lea.vmem %s6, %s492
        %p495 = scmp.eq.s32.totalorder %s36, 0
        // Predicated region
        $region73: #{tpu_custom_call.1} parent=47 // pred_check
          %p496 = pneg %p495
        $region74: #{tpu_custom_call.1} parent=47 // pred_check_branch
          %498 = sbr.rel (%p496) target = $region76
        $region75: #{tpu_custom_call.1} parent=47 // pred_region
          %v499 = vld [vmem:[%s392] sm:$0xff]
          %500 = vst [vmem:[%s488] sm:$0xff] %v499
        $region76: #{tpu_custom_call.1} parent=47 // pred_fallthru
          _
        %v501 = vld [vmem:[%s488] sm:$0xff]
        %v502 = vld [vmem:[%s493] sm:$0xff]
        %v503 = vld [vmem:[%s493 + $0x8] sm:$0xff]
        %v504 = vpack.c.bf16 %v501, %v501
        %v505 = vld [vmem:[%s405] sm:$0xff]
        %v506 = vld [vmem:[%s405 + $0x8] sm:$0xf]
        %v507 = vld [vmem:[%s405 + $0xc] sm:$0xff]
        %v508 = vld [vmem:[%s405 + $0x14] sm:$0xf]
        %v509 = vld [vmem:[%s405 + $0x18] sm:$0xff]
        %v510 = vld [vmem:[%s405 + $0x20] sm:$0xf]
        %v511 = vld [vmem:[%s405 + $0x24] sm:$0xff]
        %v512 = vld [vmem:[%s405 + $0x2c] sm:$0xf]
        %v513 = vld [vmem:[%s405 + $0x30] sm:$0xff]
        %v514 = vld [vmem:[%s405 + $0x38] sm:$0xf]
        %v515 = vld [vmem:[%s405 + $0x3c] sm:$0xff]
        %v516 = vld [vmem:[%s405 + $0x44] sm:$0xf]
        %v517 = vld [vmem:[%s405 + $0x48] sm:$0xff]
        %v518 = vld [vmem:[%s405 + $0x50] sm:$0xf]
        %v519 = vld [vmem:[%s405 + $0x54] sm:$0xff]
        %v520 = vld [vmem:[%s405 + $0x5c] sm:$0xf]
        %v521 = vld [vmem:[%s405 + $0x60] sm:$0xff]
        %v522 = vld [vmem:[%s405 + $0x68] sm:$0xf]
        %v523 = vld [vmem:[%s405 + $0x6c] sm:$0xff]
        %v524 = vld [vmem:[%s405 + $0x74] sm:$0xf]
        %v525 = vld [vmem:[%s405 + $0x78] sm:$0xff]
        %v526 = vld [vmem:[%s405 + $0x80] sm:$0xf]
        %v527 = vld [vmem:[%s405 + $0x84] sm:$0xff]
        %v528 = vld [vmem:[%s405 + $0x8c] sm:$0xf]
        %v529 = vld [vmem:[%s405 + $0x90] sm:$0xff]
        %v530 = vld [vmem:[%s405 + $0x98] sm:$0xf]
        %v531 = vld [vmem:[%s405 + $0x9c] sm:$0xff]
        %v532 = vld [vmem:[%s405 + $0xa4] sm:$0xf]
        %v533 = vld [vmem:[%s405 + $0xa8] sm:$0xff]
        %v534 = vld [vmem:[%s405 + $0xb0] sm:$0xf]
        %v535 = vld [vmem:[%s405 + $0xb4] sm:$0xff]
        %v536 = vld [vmem:[%s405 + $0xbc] sm:$0xf]
        %v569 = vunpack.c.l.b16 %v505
        %v570 = vunpack.c.h.b16 %v505
        %v571 = vunpack.c.l.b16 %v506
        %v572 = vunpack.c.l.b16 %v507
        %v573 = vunpack.c.h.b16 %v507
        %v574 = vunpack.c.l.b16 %v508
        %v575 = vunpack.c.l.b16 %v509
        %v576 = vunpack.c.h.b16 %v509
        %v577 = vunpack.c.l.b16 %v510
        %v578 = vunpack.c.l.b16 %v511
        %v579 = vunpack.c.h.b16 %v511
        %v580 = vunpack.c.l.b16 %v512
        %v581 = vunpack.c.l.b16 %v513
        %v582 = vunpack.c.h.b16 %v513
        %v583 = vunpack.c.l.b16 %v514
        %v584 = vunpack.c.l.b16 %v515
        %v585 = vunpack.c.h.b16 %v515
        %v586 = vunpack.c.l.b16 %v516
        %v587 = vunpack.c.l.b16 %v517
        %v588 = vunpack.c.h.b16 %v517
        %v589 = vunpack.c.l.b16 %v518
        %v590 = vunpack.c.l.b16 %v519
        %v591 = vunpack.c.h.b16 %v519
        %v592 = vunpack.c.l.b16 %v520
        %v593 = vunpack.c.l.b16 %v521
        %v594 = vunpack.c.h.b16 %v521
        %v595 = vunpack.c.l.b16 %v522
        %v596 = vunpack.c.l.b16 %v523
        %v597 = vunpack.c.h.b16 %v523
        %v598 = vunpack.c.l.b16 %v524
        %v599 = vunpack.c.l.b16 %v525
        %v600 = vunpack.c.h.b16 %v525
        %v601 = vunpack.c.l.b16 %v526
        %v602 = vunpack.c.l.b16 %v527
        %v603 = vunpack.c.h.b16 %v527
        %v604 = vunpack.c.l.b16 %v528
        %v605 = vunpack.c.l.b16 %v529
        %v606 = vunpack.c.h.b16 %v529
        %v607 = vunpack.c.l.b16 %v530
        %v608 = vunpack.c.l.b16 %v531
        %v609 = vunpack.c.h.b16 %v531
        %v610 = vunpack.c.l.b16 %v532
        %v611 = vunpack.c.l.b16 %v533
        %v612 = vunpack.c.h.b16 %v533
        %v613 = vunpack.c.l.b16 %v534
        %v614 = vunpack.c.l.b16 %v535
        %v615 = vunpack.c.h.b16 %v535
        %v616 = vunpack.c.l.b16 %v536
        %v617 = vpack.c.b16 %v572, %v569
        %v618 = vpack.c.b16 %v573, %v570
        %v619 = vpack.c.b16 %v574, %v571
        %v620 = vpack.c.b16 %v578, %v575
        %v621 = vpack.c.b16 %v579, %v576
        %v622 = vpack.c.b16 %v580, %v577
        %v623 = vpack.c.b16 %v584, %v581
        %v624 = vpack.c.b16 %v585, %v582
        %v625 = vpack.c.b16 %v586, %v583
        %v626 = vpack.c.b16 %v590, %v587
        %v627 = vpack.c.b16 %v591, %v588
        %v628 = vpack.c.b16 %v592, %v589
        %v629 = vpack.c.b16 %v596, %v593
        %v630 = vpack.c.b16 %v597, %v594
        %v631 = vpack.c.b16 %v598, %v595
        %v632 = vpack.c.b16 %v602, %v599
        %v633 = vpack.c.b16 %v603, %v600
        %v634 = vpack.c.b16 %v604, %v601
        %v635 = vpack.c.b16 %v608, %v605
        %v636 = vpack.c.b16 %v609, %v606
        %v637 = vpack.c.b16 %v610, %v607
        %v638 = vpack.c.b16 %v614, %v611
        %v639 = vpack.c.b16 %v615, %v612
        %v640 = vpack.c.b16 %v616, %v613
        %665 = vmatprep.subr.bf16.mxu0 %v639
        %666 = vmatpush1.bf16.msra.mxu0 %v638
        %667 = vmatprep.subr.bf16.mxu0 %v636
        %668 = vmatpush1.bf16.msra.mxu0 %v635
        %669 = vmatprep.subr.bf16.mxu0 %v633
        %670 = vmatpush1.bf16.msra.mxu0 %v632
        %671 = vmatprep.subr.bf16.mxu0 %v630
        %672 = vmatpush1.bf16.msra.mxu0 %v629
        %673 = vmatprep.subr.bf16.mxu0 %v627
        %674 = vmatpush1.bf16.msra.mxu0 %v626
        %675 = vmatprep.subr.bf16.mxu0 %v624
        %676 = vmatpush1.bf16.msra.mxu0 %v623
        %677 = vmatprep.subr.bf16.mxu0 %v621
        %678 = vmatpush1.bf16.msra.mxu0 %v620
        %679 = vmatprep.subr.bf16.mxu0 %v618
        %680 = vmatpush1.bf16.msra.mxu0 %v617
        %681 = vmatprep.subr.bf16.mxu0 0
        %682 = vmatpush2.bf16.msra.mxu0 0
        %683 = vmatprep.subr.bf16.mxu0 0
        %684 = vmatpush2.bf16.msra.mxu0 0
        %685 = vmatprep.subr.bf16.mxu0 0
        %686 = vmatpush2.bf16.msra.mxu0 0
        %687 = vmatprep.subr.bf16.mxu0 0
        %688 = vmatpush2.bf16.msra.mxu0 0
        %689 = vmatprep.subr.bf16.mxu0 0
        %690 = vmatpush2.bf16.msra.mxu0 0
        %691 = vmatprep.subr.bf16.mxu0 0
        %692 = vmatpush2.bf16.msra.mxu0 0
        %693 = vmatprep.subr.bf16.mxu0 0
        %694 = vmatpush2.bf16.msra.mxu0 0
        %695 = vmatprep.subr.bf16.mxu0 0
        %696 = vmatpush2.bf16.msra.mxu0 0
        %697 = vmatprep.mubr.bf16.mxu0 0
        %698 = vmatmul.mubr.bf16.gmra.mxu0 %v504
        %v699 = vpop.f32.mrf.mxu0
        %v700 = vadd.f32 0.0, %v699
        %v701 = vpop.f32.mrf.mxu0
        %v702 = vadd.f32 0.0, %v701
        %v703 = vpop.f32.mrf.mxu0
        %v704 = vpop.f32.mrf.mxu0
        %705 = vdwg.mxu0
        %706 = vmatprep.subr.bf16.mxu0 0
        %707 = vmatpush1.bf16.msra.mxu0 %v640
        %708 = vmatprep.subr.bf16.mxu0 0
        %709 = vmatpush1.bf16.msra.mxu0 %v637
        %710 = vmatprep.subr.bf16.mxu0 0
        %711 = vmatpush1.bf16.msra.mxu0 %v634
        %712 = vmatprep.subr.bf16.mxu0 0
        %713 = vmatpush1.bf16.msra.mxu0 %v631
        %714 = vmatprep.subr.bf16.mxu0 0
        %715 = vmatpush1.bf16.msra.mxu0 %v628
        %716 = vmatprep.subr.bf16.mxu0 0
        %717 = vmatpush1.bf16.msra.mxu0 %v625
        %718 = vmatprep.subr.bf16.mxu0 0
        %719 = vmatpush1.bf16.msra.mxu0 %v622
        %720 = vmatprep.subr.bf16.mxu0 0
        %721 = vmatpush1.bf16.msra.mxu0 %v619
        %722 = vmatprep.subr.bf16.mxu0 0
        %723 = vmatpush2.bf16.msra.mxu0 0
        %724 = vmatprep.subr.bf16.mxu0 0
        %725 = vmatpush2.bf16.msra.mxu0 0
        %726 = vmatprep.subr.bf16.mxu0 0
        %727 = vmatpush2.bf16.msra.mxu0 0
        %728 = vmatprep.subr.bf16.mxu0 0
        %729 = vmatpush2.bf16.msra.mxu0 0
        %730 = vmatprep.subr.bf16.mxu0 0
        %731 = vmatpush2.bf16.msra.mxu0 0
        %732 = vmatprep.subr.bf16.mxu0 0
        %733 = vmatpush2.bf16.msra.mxu0 0
        %734 = vmatprep.subr.bf16.mxu0 0
        %735 = vmatpush2.bf16.msra.mxu0 0
        %736 = vmatprep.subr.bf16.mxu0 0
        %737 = vmatpush2.bf16.msra.mxu0 0
        %738 = vmatprep.mubr.bf16.mxu0 0
        %739 = vmatmul.mubr.bf16.gmra.mxu0 %v504
        %v740 = vpop.f32.mrf.mxu0
        %v741 = vadd.f32 0.0, %v740
        %v742 = vpop.f32.mrf.mxu0
        %v743 = vpop.f32.mrf.mxu0
        %v744 = vpop.f32.mrf.mxu0
        %745 = vdwg.mxu0
        %v746 = vlaneseq
        %v747 = vshrl.u32 %v746, 7
        %v748 = vsub.s32 0, %v747
        %v749 = vrot.slane %v502, %v748
        %v750 = vadd.f32 %v700, %v749
        %v751 = vlaneseq
        %v752 = vshrl.u32 %v751, 7
        %v753 = vsub.s32 1, %v752
        %v754 = vrot.slane %v502, %v753
        %v755 = vadd.f32 %v702, %v754
        %v756 = vlaneseq
        %v757 = vshrl.u32 %v756, 7
        %v758 = vsub.s32 2, %v757
        %v759 = vrot.slane %v502, %v758
        %v760 = vadd.f32 %v741, %v759
        %v761 = vpack.c.bf16 %v750, %v750
        %v762 = vpack.c.bf16 %v755, %v755
        %v763 = vpack.c.bf16 %v760, %v760
        %vm764 = vcmask 261120
        %v766 = vsel %vm764, %v761, 0
        %v769 = vsel %vm764, %v762, 0
        %771 = vmatprep.subr.bf16.mxu0 0
        %772 = vmatpush1.bf16.xpose.msra.mxu0 0
        %773 = vmatprep.subr.bf16.mxu0 0
        %774 = vmatpush1.bf16.xpose.msra.mxu0 0
        %775 = vmatprep.subr.bf16.mxu0 0
        %776 = vmatpush1.bf16.xpose.msra.mxu0 0
        %777 = vmatprep.subr.bf16.mxu0 0
        %778 = vmatpush1.bf16.xpose.msra.mxu0 0
        %779 = vmatprep.subr.bf16.mxu0 0
        %780 = vmatpush1.bf16.xpose.msra.mxu0 0
        %781 = vmatprep.subr.bf16.mxu0 0
        %782 = vmatpush1.bf16.xpose.msra.mxu0 0
        %783 = vmatprep.subr.bf16.mxu0 0
        %784 = vmatpush1.bf16.xpose.msra.mxu0 0
        %785 = vmatprep.subr.bf16.mxu0 0
        %786 = vmatpush1.bf16.xpose.msra.mxu0 %v769
        %787 = vmatprep.subr.bf16.mxu0 0
        %788 = vmatpush2.bf16.xpose.msra.mxu0 0
        %789 = vmatprep.subr.bf16.mxu0 0
        %790 = vmatpush2.bf16.xpose.msra.mxu0 0
        %791 = vmatprep.subr.bf16.mxu0 0
        %792 = vmatpush2.bf16.xpose.msra.mxu0 0
        %793 = vmatprep.subr.bf16.mxu0 0
        %794 = vmatpush2.bf16.xpose.msra.mxu0 0
        %795 = vmatprep.subr.bf16.mxu0 0
        %796 = vmatpush2.bf16.xpose.msra.mxu0 0
        %797 = vmatprep.subr.bf16.mxu0 0
        %798 = vmatpush2.bf16.xpose.msra.mxu0 0
        %799 = vmatprep.subr.bf16.mxu0 0
        %800 = vmatpush2.bf16.xpose.msra.mxu0 0
        %801 = vmatprep.subr.bf16.mxu0 0
        %802 = vmatpush2.bf16.xpose.msra.mxu0 0
        %803 = vmatprep.mubr.bf16.mxu0 0
        %804 = vmatmul.mubr.bf16.gmra.mxu0 %v766
        %v805 = vpop.f32.mrf.mxu0
        %v806 = vadd.f32 0.0, %v805
        %v807 = vpop.f32.mrf.mxu0
        %v808 = vpop.f32.mrf.mxu0
        %v809 = vpop.f32.mrf.mxu0
        %810 = vdwg.mxu0
        %v811 = vmul.f32 %v806, 0.35355338
        %vm812 = vcmask 64512
        %v813 = vsel %vm812, %v811, -inf
        %814 = vmax.xlane.f32.xlu0 %v813
        %v815 = vpop.xlane.xlu0 %814
        %v816 = vsub.f32 %v811, %v815
        %v817 = vmul.f32 %v816, 1.442695
        %v818 = vpow.pop %v817
        %v819 = vsel %vm812, %v818, 0.0
        %820 = vadd.xlane.f32.xlu0 %v819
        %v821 = vpop.xlane.xlu0 %820
        %v822 = vrcp.pop %v821
        %v823 = vmul.f32 %v818, %v822
        %v824 = vpack.c.bf16 %v823, %v823
        %v826 = vsel %vm812, %v824, 0
        %vm828 = vcmask 1043456
        %v830 = vsel %vm828, %v763, 0
        %832 = vmatprep.subr.bf16.mxu0 0
        %833 = vmatpush1.bf16.msra.mxu0 0
        %834 = vmatprep.subr.bf16.mxu0 0
        %835 = vmatpush1.bf16.msra.mxu0 0
        %836 = vmatprep.subr.bf16.mxu0 0
        %837 = vmatpush1.bf16.msra.mxu0 0
        %838 = vmatprep.subr.bf16.mxu0 0
        %839 = vmatpush1.bf16.msra.mxu0 0
        %840 = vmatprep.subr.bf16.mxu0 0
        %841 = vmatpush1.bf16.msra.mxu0 0
        %842 = vmatprep.subr.bf16.mxu0 0
        %843 = vmatpush1.bf16.msra.mxu0 0
        %844 = vmatprep.subr.bf16.mxu0 0
        %845 = vmatpush1.bf16.msra.mxu0 0
        %846 = vmatprep.subr.bf16.mxu0 0
        %847 = vmatpush1.bf16.msra.mxu0 %v830
        %848 = vmatprep.subr.bf16.mxu0 0
        %849 = vmatpush2.bf16.msra.mxu0 0
        %850 = vmatprep.subr.bf16.mxu0 0
        %851 = vmatpush2.bf16.msra.mxu0 0
        %852 = vmatprep.subr.bf16.mxu0 0
        %853 = vmatpush2.bf16.msra.mxu0 0
        %854 = vmatprep.subr.bf16.mxu0 0
        %855 = vmatpush2.bf16.msra.mxu0 0
        %856 = vmatprep.subr.bf16.mxu0 0
        %857 = vmatpush2.bf16.msra.mxu0 0
        %858 = vmatprep.subr.bf16.mxu0 0
        %859 = vmatpush2.bf16.msra.mxu0 0
        %860 = vmatprep.subr.bf16.mxu0 0
        %861 = vmatpush2.bf16.msra.mxu0 0
        %862 = vmatprep.subr.bf16.mxu0 0
        %863 = vmatpush2.bf16.msra.mxu0 0
        %864 = vmatprep.mubr.bf16.mxu0 0
        %865 = vmatmul.mubr.bf16.gmra.mxu0 %v826
        %v866 = vpop.f32.mrf.mxu0
        %v867 = vadd.f32 0.0, %v866
        %v868 = vpop.f32.mrf.mxu0
        %v869 = vpop.f32.mrf.mxu0
        %v870 = vpop.f32.mrf.mxu0
        %871 = vdwg.mxu0
        %873 = vrot.lane.b32.xlu0 %v761, 96
        %v874 = vpop.permute.xlu0 %873
        %876 = vrot.lane.b32.xlu0 %v762, 96
        %v877 = vpop.permute.xlu0 %876
        %v879 = vsel %vm764, %v874, 0
        %v882 = vsel %vm764, %v877, 0
        %884 = vmatprep.subr.bf16.mxu0 0
        %885 = vmatpush1.bf16.xpose.msra.mxu0 0
        %886 = vmatprep.subr.bf16.mxu0 0
        %887 = vmatpush1.bf16.xpose.msra.mxu0 0
        %888 = vmatprep.subr.bf16.mxu0 0
        %889 = vmatpush1.bf16.xpose.msra.mxu0 0
        %890 = vmatprep.subr.bf16.mxu0 0
        %891 = vmatpush1.bf16.xpose.msra.mxu0 0
        %892 = vmatprep.subr.bf16.mxu0 0
        %893 = vmatpush1.bf16.xpose.msra.mxu0 0
        %894 = vmatprep.subr.bf16.mxu0 0
        %895 = vmatpush1.bf16.xpose.msra.mxu0 0
        %896 = vmatprep.subr.bf16.mxu0 0
        %897 = vmatpush1.bf16.xpose.msra.mxu0 0
        %898 = vmatprep.subr.bf16.mxu0 0
        %899 = vmatpush1.bf16.xpose.msra.mxu0 %v882
        %900 = vmatprep.subr.bf16.mxu0 0
        %901 = vmatpush2.bf16.xpose.msra.mxu0 0
        %902 = vmatprep.subr.bf16.mxu0 0
        %903 = vmatpush2.bf16.xpose.msra.mxu0 0
        %904 = vmatprep.subr.bf16.mxu0 0
        %905 = vmatpush2.bf16.xpose.msra.mxu0 0
        %906 = vmatprep.subr.bf16.mxu0 0
        %907 = vmatpush2.bf16.xpose.msra.mxu0 0
        %908 = vmatprep.subr.bf16.mxu0 0
        %909 = vmatpush2.bf16.xpose.msra.mxu0 0
        %910 = vmatprep.subr.bf16.mxu0 0
        %911 = vmatpush2.bf16.xpose.msra.mxu0 0
        %912 = vmatprep.subr.bf16.mxu0 0
        %913 = vmatpush2.bf16.xpose.msra.mxu0 0
        %914 = vmatprep.subr.bf16.mxu0 0
        %915 = vmatpush2.bf16.xpose.msra.mxu0 0
        %916 = vmatprep.mubr.bf16.mxu0 0
        %917 = vmatmul.mubr.bf16.gmra.mxu0 %v879
        %v918 = vpop.f32.mrf.mxu0
        %v919 = vadd.f32 0.0, %v918
        %v920 = vpop.f32.mrf.mxu0
        %v921 = vpop.f32.mrf.mxu0
        %v922 = vpop.f32.mrf.mxu0
        %923 = vdwg.mxu0
        %v924 = vmul.f32 %v919, 0.35355338
        %v925 = vsel %vm812, %v924, -inf
        %926 = vmax.xlane.f32.xlu0 %v925
        %v927 = vpop.xlane.xlu0 %926
        %v928 = vsub.f32 %v924, %v927
        %v929 = vmul.f32 %v928, 1.442695
        %v930 = vpow.pop %v929
        %v931 = vsel %vm812, %v930, 0.0
        %932 = vadd.xlane.f32.xlu0 %v931
        %v933 = vpop.xlane.xlu0 %932
        %v934 = vrcp.pop %v933
        %v935 = vmul.f32 %v930, %v934
        %v936 = vpack.c.bf16 %v935, %v935
        %938 = vrot.lane.b32.xlu0 %v763, 96
        %v939 = vpop.permute.xlu0 %938
        %v941 = vsel %vm812, %v936, 0
        %v944 = vsel %vm828, %v939, 0
        %946 = vmatprep.subr.bf16.mxu0 0
        %947 = vmatpush1.bf16.msra.mxu0 0
        %948 = vmatprep.subr.bf16.mxu0 0
        %949 = vmatpush1.bf16.msra.mxu0 0
        %950 = vmatprep.subr.bf16.mxu0 0
        %951 = vmatpush1.bf16.msra.mxu0 0
        %952 = vmatprep.subr.bf16.mxu0 0
        %953 = vmatpush1.bf16.msra.mxu0 0
        %954 = vmatprep.subr.bf16.mxu0 0
        %955 = vmatpush1.bf16.msra.mxu0 0
        %956 = vmatprep.subr.bf16.mxu0 0
        %957 = vmatpush1.bf16.msra.mxu0 0
        %958 = vmatprep.subr.bf16.mxu0 0
        %959 = vmatpush1.bf16.msra.mxu0 0
        %960 = vmatprep.subr.bf16.mxu0 0
        %961 = vmatpush1.bf16.msra.mxu0 %v944
        %962 = vmatprep.subr.bf16.mxu0 0
        %963 = vmatpush2.bf16.msra.mxu0 0
        %964 = vmatprep.subr.bf16.mxu0 0
        %965 = vmatpush2.bf16.msra.mxu0 0
        %966 = vmatprep.subr.bf16.mxu0 0
        %967 = vmatpush2.bf16.msra.mxu0 0
        %968 = vmatprep.subr.bf16.mxu0 0
        %969 = vmatpush2.bf16.msra.mxu0 0
        %970 = vmatprep.subr.bf16.mxu0 0
        %971 = vmatpush2.bf16.msra.mxu0 0
        %972 = vmatprep.subr.bf16.mxu0 0
        %973 = vmatpush2.bf16.msra.mxu0 0
        %974 = vmatprep.subr.bf16.mxu0 0
        %975 = vmatpush2.bf16.msra.mxu0 0
        %976 = vmatprep.subr.bf16.mxu0 0
        %977 = vmatpush2.bf16.msra.mxu0 0
        %978 = vmatprep.mubr.bf16.mxu0 0
        %979 = vmatmul.mubr.bf16.gmra.mxu0 %v941
        %v980 = vpop.f32.mrf.mxu0
        %v981 = vadd.f32 0.0, %v980
        %v982 = vpop.f32.mrf.mxu0
        %v983 = vpop.f32.mrf.mxu0
        %v984 = vpop.f32.mrf.mxu0
        %985 = vdwg.mxu0
        %986 = vrot.lane.b32.xlu0 %v761, 64
        %v987 = vpop.permute.xlu0 %986
        %988 = vrot.lane.b32.xlu0 %v762, 64
        %v989 = vpop.permute.xlu0 %988
        %v991 = vsel %vm764, %v987, 0
        %v994 = vsel %vm764, %v989, 0
        %996 = vmatprep.subr.bf16.mxu0 0
        %997 = vmatpush1.bf16.xpose.msra.mxu0 0
        %998 = vmatprep.subr.bf16.mxu0 0
        %999 = vmatpush1.bf16.xpose.msra.mxu0 0
        %1000 = vmatprep.subr.bf16.mxu0 0
        %1001 = vmatpush1.bf16.xpose.msra.mxu0 0
        %1002 = vmatprep.subr.bf16.mxu0 0
        %1003 = vmatpush1.bf16.xpose.msra.mxu0 0
        %1004 = vmatprep.subr.bf16.mxu0 0
        %1005 = vmatpush1.bf16.xpose.msra.mxu0 0
        %1006 = vmatprep.subr.bf16.mxu0 0
        %1007 = vmatpush1.bf16.xpose.msra.mxu0 0
        %1008 = vmatprep.subr.bf16.mxu0 0
        %1009 = vmatpush1.bf16.xpose.msra.mxu0 0
        %1010 = vmatprep.subr.bf16.mxu0 0
        %1011 = vmatpush1.bf16.xpose.msra.mxu0 %v994
        %1012 = vmatprep.subr.bf16.mxu0 0
        %1013 = vmatpush2.bf16.xpose.msra.mxu0 0
        %1014 = vmatprep.subr.bf16.mxu0 0
        %1015 = vmatpush2.bf16.xpose.msra.mxu0 0
        %1016 = vmatprep.subr.bf16.mxu0 0
        %1017 = vmatpush2.bf16.xpose.msra.mxu0 0
        %1018 = vmatprep.subr.bf16.mxu0 0
        %1019 = vmatpush2.bf16.xpose.msra.mxu0 0
        %1020 = vmatprep.subr.bf16.mxu0 0
        %1021 = vmatpush2.bf16.xpose.msra.mxu0 0
        %1022 = vmatprep.subr.bf16.mxu0 0
        %1023 = vmatpush2.bf16.xpose.msra.mxu0 0
        %1024 = vmatprep.subr.bf16.mxu0 0
        %1025 = vmatpush2.bf16.xpose.msra.mxu0 0
        %1026 = vmatprep.subr.bf16.mxu0 0
        %1027 = vmatpush2.bf16.xpose.msra.mxu0 0
        %1028 = vmatprep.mubr.bf16.mxu0 0
        %1029 = vmatmul.mubr.bf16.gmra.mxu0 %v991
        %v1030 = vpop.f32.mrf.mxu0
        %v1031 = vadd.f32 0.0, %v1030
        %v1032 = vpop.f32.mrf.mxu0
        %v1033 = vpop.f32.mrf.mxu0
        %v1034 = vpop.f32.mrf.mxu0
        %1035 = vdwg.mxu0
        %v1036 = vmul.f32 %v1031, 0.35355338
        %v1037 = vsel %vm812, %v1036, -inf
        %1038 = vmax.xlane.f32.xlu0 %v1037
        %v1039 = vpop.xlane.xlu0 %1038
        %v1040 = vsub.f32 %v1036, %v1039
        %v1041 = vmul.f32 %v1040, 1.442695
        %v1042 = vpow.pop %v1041
        %v1043 = vsel %vm812, %v1042, 0.0
        %1044 = vadd.xlane.f32.xlu0 %v1043
        %v1045 = vpop.xlane.xlu0 %1044
        %v1046 = vrcp.pop %v1045
        %v1047 = vmul.f32 %v1042, %v1046
        %v1048 = vpack.c.bf16 %v1047, %v1047
        %1049 = vrot.lane.b32.xlu0 %v763, 64
        %v1050 = vpop.permute.xlu0 %1049
        %v1052 = vsel %vm812, %v1048, 0
        %v1055 = vsel %vm828, %v1050, 0
        %1057 = vmatprep.subr.bf16.mxu0 0
        %1058 = vmatpush1.bf16.msra.mxu0 0
        %1059 = vmatprep.subr.bf16.mxu0 0
        %1060 = vmatpush1.bf16.msra.mxu0 0
        %1061 = vmatprep.subr.bf16.mxu0 0
        %1062 = vmatpush1.bf16.msra.mxu0 0
        %1063 = vmatprep.subr.bf16.mxu0 0
        %1064 = vmatpush1.bf16.msra.mxu0 0
        %1065 = vmatprep.subr.bf16.mxu0 0
        %1066 = vmatpush1.bf16.msra.mxu0 0
        %1067 = vmatprep.subr.bf16.mxu0 0
        %1068 = vmatpush1.bf16.msra.mxu0 0
        %1069 = vmatprep.subr.bf16.mxu0 0
        %1070 = vmatpush1.bf16.msra.mxu0 0
        %1071 = vmatprep.subr.bf16.mxu0 0
        %1072 = vmatpush1.bf16.msra.mxu0 %v1055
        %1073 = vmatprep.subr.bf16.mxu0 0
        %1074 = vmatpush2.bf16.msra.mxu0 0
        %1075 = vmatprep.subr.bf16.mxu0 0
        %1076 = vmatpush2.bf16.msra.mxu0 0
        %1077 = vmatprep.subr.bf16.mxu0 0
        %1078 = vmatpush2.bf16.msra.mxu0 0
        %1079 = vmatprep.subr.bf16.mxu0 0
        %1080 = vmatpush2.bf16.msra.mxu0 0
        %1081 = vmatprep.subr.bf16.mxu0 0
        %1082 = vmatpush2.bf16.msra.mxu0 0
        %1083 = vmatprep.subr.bf16.mxu0 0
        %1084 = vmatpush2.bf16.msra.mxu0 0
        %1085 = vmatprep.subr.bf16.mxu0 0
        %1086 = vmatpush2.bf16.msra.mxu0 0
        %1087 = vmatprep.subr.bf16.mxu0 0
        %1088 = vmatpush2.bf16.msra.mxu0 0
        %1089 = vmatprep.mubr.bf16.mxu0 0
        %1090 = vmatmul.mubr.bf16.gmra.mxu0 %v1052
        %v1091 = vpop.f32.mrf.mxu0
        %v1092 = vadd.f32 0.0, %v1091
        %v1093 = vpop.f32.mrf.mxu0
        %v1094 = vpop.f32.mrf.mxu0
        %v1095 = vpop.f32.mrf.mxu0
        %1096 = vdwg.mxu0
        %1097 = vrot.lane.b32.xlu0 %v761, 32
        %v1098 = vpop.permute.xlu0 %1097
        %1099 = vrot.lane.b32.xlu0 %v762, 32
        %v1100 = vpop.permute.xlu0 %1099
        %v1102 = vsel %vm764, %v1098, 0
        %v1105 = vsel %vm764, %v1100, 0
        %1107 = vmatprep.subr.bf16.mxu0 0
        %1108 = vmatpush1.bf16.xpose.msra.mxu0 0
        %1109 = vmatprep.subr.bf16.mxu0 0
        %1110 = vmatpush1.bf16.xpose.msra.mxu0 0
        %1111 = vmatprep.subr.bf16.mxu0 0
        %1112 = vmatpush1.bf16.xpose.msra.mxu0 0
        %1113 = vmatprep.subr.bf16.mxu0 0
        %1114 = vmatpush1.bf16.xpose.msra.mxu0 0
        %1115 = vmatprep.subr.bf16.mxu0 0
        %1116 = vmatpush1.bf16.xpose.msra.mxu0 0
        %1117 = vmatprep.subr.bf16.mxu0 0
        %1118 = vmatpush1.bf16.xpose.msra.mxu0 0
        %1119 = vmatprep.subr.bf16.mxu0 0
        %1120 = vmatpush1.bf16.xpose.msra.mxu0 0
        %1121 = vmatprep.subr.bf16.mxu0 0
        %1122 = vmatpush1.bf16.xpose.msra.mxu0 %v1105
        %1123 = vmatprep.subr.bf16.mxu0 0
        %1124 = vmatpush2.bf16.xpose.msra.mxu0 0
        %1125 = vmatprep.subr.bf16.mxu0 0
        %1126 = vmatpush2.bf16.xpose.msra.mxu0 0
        %1127 = vmatprep.subr.bf16.mxu0 0
        %1128 = vmatpush2.bf16.xpose.msra.mxu0 0
        %1129 = vmatprep.subr.bf16.mxu0 0
        %1130 = vmatpush2.bf16.xpose.msra.mxu0 0
        %1131 = vmatprep.subr.bf16.mxu0 0
        %1132 = vmatpush2.bf16.xpose.msra.mxu0 0
        %1133 = vmatprep.subr.bf16.mxu0 0
        %1134 = vmatpush2.bf16.xpose.msra.mxu0 0
        %1135 = vmatprep.subr.bf16.mxu0 0
        %1136 = vmatpush2.bf16.xpose.msra.mxu0 0
        %1137 = vmatprep.subr.bf16.mxu0 0
        %1138 = vmatpush2.bf16.xpose.msra.mxu0 0
        %1139 = vmatprep.mubr.bf16.mxu0 0
        %1140 = vmatmul.mubr.bf16.gmra.mxu0 %v1102
        %v1141 = vpop.f32.mrf.mxu0
        %v1142 = vadd.f32 0.0, %v1141
        %v1143 = vpop.f32.mrf.mxu0
        %v1144 = vpop.f32.mrf.mxu0
        %v1145 = vpop.f32.mrf.mxu0
        %1146 = vdwg.mxu0
        %v1147 = vmul.f32 %v1142, 0.35355338
        %v1148 = vsel %vm812, %v1147, -inf
        %1149 = vmax.xlane.f32.xlu0 %v1148
        %v1150 = vpop.xlane.xlu0 %1149
        %v1151 = vsub.f32 %v1147, %v1150
        %v1152 = vmul.f32 %v1151, 1.442695
        %v1153 = vpow.pop %v1152
        %v1154 = vsel %vm812, %v1153, 0.0
        %1155 = vadd.xlane.f32.xlu0 %v1154
        %v1156 = vpop.xlane.xlu0 %1155
        %v1157 = vrcp.pop %v1156
        %v1158 = vmul.f32 %v1153, %v1157
        %v1159 = vpack.c.bf16 %v1158, %v1158
        %1160 = vrot.lane.b32.xlu0 %v763, 32
        %v1161 = vpop.permute.xlu0 %1160
        %v1163 = vsel %vm812, %v1159, 0
        %v1166 = vsel %vm828, %v1161, 0
        %1168 = vmatprep.subr.bf16.mxu0 0
        %1169 = vmatpush1.bf16.msra.mxu0 0
        %1170 = vmatprep.subr.bf16.mxu0 0
        %1171 = vmatpush1.bf16.msra.mxu0 0
        %1172 = vmatprep.subr.bf16.mxu0 0
        %1173 = vmatpush1.bf16.msra.mxu0 0
        %1174 = vmatprep.subr.bf16.mxu0 0
        %1175 = vmatpush1.bf16.msra.mxu0 0
        %1176 = vmatprep.subr.bf16.mxu0 0
        %1177 = vmatpush1.bf16.msra.mxu0 0
        %1178 = vmatprep.subr.bf16.mxu0 0
        %1179 = vmatpush1.bf16.msra.mxu0 0
        %1180 = vmatprep.subr.bf16.mxu0 0
        %1181 = vmatpush1.bf16.msra.mxu0 0
        %1182 = vmatprep.subr.bf16.mxu0 0
        %1183 = vmatpush1.bf16.msra.mxu0 %v1166
        %1184 = vmatprep.subr.bf16.mxu0 0
        %1185 = vmatpush2.bf16.msra.mxu0 0
        %1186 = vmatprep.subr.bf16.mxu0 0
        %1187 = vmatpush2.bf16.msra.mxu0 0
        %1188 = vmatprep.subr.bf16.mxu0 0
        %1189 = vmatpush2.bf16.msra.mxu0 0
        %1190 = vmatprep.subr.bf16.mxu0 0
        %1191 = vmatpush2.bf16.msra.mxu0 0
        %1192 = vmatprep.subr.bf16.mxu0 0
        %1193 = vmatpush2.bf16.msra.mxu0 0
        %1194 = vmatprep.subr.bf16.mxu0 0
        %1195 = vmatpush2.bf16.msra.mxu0 0
        %1196 = vmatprep.subr.bf16.mxu0 0
        %1197 = vmatpush2.bf16.msra.mxu0 0
        %1198 = vmatprep.subr.bf16.mxu0 0
        %1199 = vmatpush2.bf16.msra.mxu0 0
        %1200 = vmatprep.mubr.bf16.mxu0 0
        %1201 = vmatmul.mubr.bf16.gmra.mxu0 %v1163
        %v1202 = vpop.f32.mrf.mxu0
        %v1203 = vadd.f32 0.0, %v1202
        %v1204 = vpop.f32.mrf.mxu0
        %v1205 = vpop.f32.mrf.mxu0
        %v1206 = vpop.f32.mrf.mxu0
        %1207 = vdwg.mxu0
        %1209 = vrot.lane.b32.xlu0 %v981, 32
        %v1210 = vpop.permute.xlu0 %1209
        %1213 = vrot.lane.b32.xlu0 %v1092, 64
        %v1214 = vpop.permute.xlu0 %1213
        %1217 = vrot.lane.b32.xlu0 %v1203, 96
        %v1218 = vpop.permute.xlu0 %1217
        %v1220 = vsel %vm764, %v867, %v1210
        %vm1221 = vcmask 523264
        %v1222 = vsel %vm1221, %v1220, %v1214
        %vm1223 = vcmask 785408
        %v1224 = vsel %vm1223, %v1222, %v1218
        %v1225 = vpack.c.bf16 %v1224, %v1224
        %v1226 = vld [vmem:[%s414] sm:$0xf]
        %v1227 = vld [vmem:[%s414 + $0x4] sm:$0xf]
        %v1228 = vld [vmem:[%s414 + $0x8] sm:$0xf]
        %v1229 = vld [vmem:[%s414 + $0xc] sm:$0xf]
        %v1230 = vld [vmem:[%s414 + $0x10] sm:$0xf]
        %v1231 = vld [vmem:[%s414 + $0x14] sm:$0xf]
        %v1232 = vld [vmem:[%s414 + $0x18] sm:$0xf]
        %v1233 = vld [vmem:[%s414 + $0x1c] sm:$0xf]
        %v1234 = vld [vmem:[%s414 + $0x20] sm:$0xf]
        %v1235 = vld [vmem:[%s414 + $0x24] sm:$0xf]
        %v1236 = vld [vmem:[%s414 + $0x28] sm:$0xf]
        %v1237 = vld [vmem:[%s414 + $0x2c] sm:$0xf]
        %v1238 = vld [vmem:[%s414 + $0x30] sm:$0xf]
        %v1239 = vld [vmem:[%s414 + $0x34] sm:$0xf]
        %v1240 = vld [vmem:[%s414 + $0x38] sm:$0xf]
        %v1241 = vld [vmem:[%s414 + $0x3c] sm:$0xf]
        %v1242 = vlaneseq
        %v1243 = vshrl.u32 %v1242, 7
        %v1244 = vsub.s32 3, %v1243
        %v1245 = vrot.slane %v502, %v1244
        %v1262 = vunpack.c.l.b16 %v1226
        %v1263 = vunpack.c.l.b16 %v1227
        %v1264 = vunpack.c.l.b16 %v1228
        %v1265 = vunpack.c.l.b16 %v1229
        %v1266 = vunpack.c.l.b16 %v1230
        %v1267 = vunpack.c.l.b16 %v1231
        %v1268 = vunpack.c.l.b16 %v1232
        %v1269 = vunpack.c.l.b16 %v1233
        %v1270 = vunpack.c.l.b16 %v1234
        %v1271 = vunpack.c.l.b16 %v1235
        %v1272 = vunpack.c.l.b16 %v1236
        %v1273 = vunpack.c.l.b16 %v1237
        %v1274 = vunpack.c.l.b16 %v1238
        %v1275 = vunpack.c.l.b16 %v1239
        %v1276 = vunpack.c.l.b16 %v1240
        %v1277 = vunpack.c.l.b16 %v1241
        %v1278 = vpack.c.b16 %v1263, %v1262
        %v1279 = vpack.c.b16 %v1265, %v1264
        %v1280 = vpack.c.b16 %v1267, %v1266
        %v1281 = vpack.c.b16 %v1269, %v1268
        %v1282 = vpack.c.b16 %v1271, %v1270
        %v1283 = vpack.c.b16 %v1273, %v1272
        %v1284 = vpack.c.b16 %v1275, %v1274
        %v1285 = vpack.c.b16 %v1277, %v1276
        %1294 = vmatprep.subr.bf16.mxu0 0
        %1295 = vmatpush1.bf16.msra.mxu0 %v1285
        %1296 = vmatprep.subr.bf16.mxu0 0
        %1297 = vmatpush1.bf16.msra.mxu0 %v1284
        %1298 = vmatprep.subr.bf16.mxu0 0
        %1299 = vmatpush1.bf16.msra.mxu0 %v1283
        %1300 = vmatprep.subr.bf16.mxu0 0
        %1301 = vmatpush1.bf16.msra.mxu0 %v1282
        %1302 = vmatprep.subr.bf16.mxu0 0
        %1303 = vmatpush1.bf16.msra.mxu0 %v1281
        %1304 = vmatprep.subr.bf16.mxu0 0
        %1305 = vmatpush1.bf16.msra.mxu0 %v1280
        %1306 = vmatprep.subr.bf16.mxu0 0
        %1307 = vmatpush1.bf16.msra.mxu0 %v1279
        %1308 = vmatprep.subr.bf16.mxu0 0
        %1309 = vmatpush1.bf16.msra.mxu0 %v1278
        %1310 = vmatprep.subr.bf16.mxu0 0
        %1311 = vmatpush2.bf16.msra.mxu0 0
        %1312 = vmatprep.subr.bf16.mxu0 0
        %1313 = vmatpush2.bf16.msra.mxu0 0
        %1314 = vmatprep.subr.bf16.mxu0 0
        %1315 = vmatpush2.bf16.msra.mxu0 0
        %1316 = vmatprep.subr.bf16.mxu0 0
        %1317 = vmatpush2.bf16.msra.mxu0 0
        %1318 = vmatprep.subr.bf16.mxu0 0
        %1319 = vmatpush2.bf16.msra.mxu0 0
        %1320 = vmatprep.subr.bf16.mxu0 0
        %1321 = vmatpush2.bf16.msra.mxu0 0
        %1322 = vmatprep.subr.bf16.mxu0 0
        %1323 = vmatpush2.bf16.msra.mxu0 0
        %1324 = vmatprep.subr.bf16.mxu0 0
        %1325 = vmatpush2.bf16.msra.mxu0 0
        %1326 = vmatprep.mubr.bf16.mxu0 0
        %1327 = vmatmul.mubr.bf16.gmra.mxu0 %v1225
        %v1328 = vpop.f32.mrf.mxu0
        %v1329 = vadd.f32 %v1245, %v1328
        %v1330 = vpop.f32.mrf.mxu0
        %v1331 = vpop.f32.mrf.mxu0
        %v1332 = vpop.f32.mrf.mxu0
        %1333 = vdwg.mxu0
        %v1334 = vadd.f32 %v501, %v1329
        %1335 = vadd.xlane.f32.xlu0 %v1334
        %v1336 = vpop.xlane.xlu0 %1335
        %v1337 = vmul.f32 %v1336, 0.03125
        %v1338 = vmul.f32 %v1334, %v1334
        %1339 = vadd.xlane.f32.xlu0 %v1338
        %v1340 = vpop.xlane.xlu0 %1339
        %v1341 = vmul.f32 %v1340, 0.03125
        %v1342 = vmul.f32 %v1337, %v1337
        %v1343 = vsub.f32 %v1341, %v1342
        %v1344 = vsub.f32 %v1334, %v1337
        %v1345 = vadd.f32 %v1343, 1e-05
        %v1346 = vrsqrt.pop %v1345
        %v1347 = vmul.f32 %v1344, %v1346
        %v1348 = vlaneseq
        %v1349 = vshrl.u32 %v1348, 7
        %v1350 = vsub.s32 4, %v1349
        %v1351 = vrot.slane %v502, %v1350
        %v1352 = vmul.f32 %v1347, %v1351
        %v1353 = vlaneseq
        %v1354 = vshrl.u32 %v1353, 7
        %v1355 = vsub.s32 5, %v1354
        %v1356 = vrot.slane %v502, %v1355
        %v1357 = vadd.f32 %v1352, %v1356
        %s1358 = sld [smem:[#allocation6 + %s36]]
        %v1359 = vpack.c.bf16 %v1357, %v1357
        %v1360 = vld [vmem:[%s423] sm:$0xf]
        %v1361 = vld [vmem:[%s423 + $0x4] sm:$0xf]
        %v1362 = vld [vmem:[%s423 + $0x8] sm:$0xf]
        %v1363 = vld [vmem:[%s423 + $0xc] sm:$0xf]
        %v1364 = vld [vmem:[%s423 + $0x10] sm:$0xf]
        %v1365 = vld [vmem:[%s423 + $0x14] sm:$0xf]
        %v1366 = vld [vmem:[%s423 + $0x18] sm:$0xf]
        %v1367 = vld [vmem:[%s423 + $0x1c] sm:$0xf]
        %v1368 = vld [vmem:[%s423 + $0x20] sm:$0xf]
        %v1369 = vld [vmem:[%s423 + $0x24] sm:$0xf]
        %v1370 = vld [vmem:[%s423 + $0x28] sm:$0xf]
        %v1371 = vld [vmem:[%s423 + $0x2c] sm:$0xf]
        %v1372 = vld [vmem:[%s423 + $0x30] sm:$0xf]
        %v1373 = vld [vmem:[%s423 + $0x34] sm:$0xf]
        %v1374 = vld [vmem:[%s423 + $0x38] sm:$0xf]
        %v1375 = vld [vmem:[%s423 + $0x3c] sm:$0xf]
        %v1376 = vlaneseq
        %v1377 = vshrl.u32 %v1376, 7
        %v1378 = vsub.s32 6, %v1377
        %v1379 = vrot.slane %v502, %v1378
        %v1396 = vunpack.c.l.b16 %v1360
        %v1397 = vunpack.c.l.b16 %v1361
        %v1398 = vunpack.c.l.b16 %v1362
        %v1399 = vunpack.c.l.b16 %v1363
        %v1400 = vunpack.c.l.b16 %v1364
        %v1401 = vunpack.c.l.b16 %v1365
        %v1402 = vunpack.c.l.b16 %v1366
        %v1403 = vunpack.c.l.b16 %v1367
        %v1404 = vunpack.c.l.b16 %v1368
        %v1405 = vunpack.c.l.b16 %v1369
        %v1406 = vunpack.c.l.b16 %v1370
        %v1407 = vunpack.c.l.b16 %v1371
        %v1408 = vunpack.c.l.b16 %v1372
        %v1409 = vunpack.c.l.b16 %v1373
        %v1410 = vunpack.c.l.b16 %v1374
        %v1411 = vunpack.c.l.b16 %v1375
        %v1412 = vpack.c.b16 %v1397, %v1396
        %v1413 = vpack.c.b16 %v1399, %v1398
        %v1414 = vpack.c.b16 %v1401, %v1400
        %v1415 = vpack.c.b16 %v1403, %v1402
        %v1416 = vpack.c.b16 %v1405, %v1404
        %v1417 = vpack.c.b16 %v1407, %v1406
        %v1418 = vpack.c.b16 %v1409, %v1408
        %v1419 = vpack.c.b16 %v1411, %v1410
        %1428 = vmatprep.subr.bf16.mxu0 0
        %1429 = vmatpush1.bf16.msra.mxu0 %v1419
        %1430 = vmatprep.subr.bf16.mxu0 0
        %1431 = vmatpush1.bf16.msra.mxu0 %v1418
        %1432 = vmatprep.subr.bf16.mxu0 0
        %1433 = vmatpush1.bf16.msra.mxu0 %v1417
        %1434 = vmatprep.subr.bf16.mxu0 0
        %1435 = vmatpush1.bf16.msra.mxu0 %v1416
        %1436 = vmatprep.subr.bf16.mxu0 0
        %1437 = vmatpush1.bf16.msra.mxu0 %v1415
        %1438 = vmatprep.subr.bf16.mxu0 0
        %1439 = vmatpush1.bf16.msra.mxu0 %v1414
        %1440 = vmatprep.subr.bf16.mxu0 0
        %1441 = vmatpush1.bf16.msra.mxu0 %v1413
        %1442 = vmatprep.subr.bf16.mxu0 0
        %1443 = vmatpush1.bf16.msra.mxu0 %v1412
        %1444 = vmatprep.subr.bf16.mxu0 0
        %1445 = vmatpush2.bf16.msra.mxu0 0
        %1446 = vmatprep.subr.bf16.mxu0 0
        %1447 = vmatpush2.bf16.msra.mxu0 0
        %1448 = vmatprep.subr.bf16.mxu0 0
        %1449 = vmatpush2.bf16.msra.mxu0 0
        %1450 = vmatprep.subr.bf16.mxu0 0
        %1451 = vmatpush2.bf16.msra.mxu0 0
        %1452 = vmatprep.subr.bf16.mxu0 0
        %1453 = vmatpush2.bf16.msra.mxu0 0
        %1454 = vmatprep.subr.bf16.mxu0 0
        %1455 = vmatpush2.bf16.msra.mxu0 0
        %1456 = vmatprep.subr.bf16.mxu0 0
        %1457 = vmatpush2.bf16.msra.mxu0 0
        %1458 = vmatprep.subr.bf16.mxu0 0
        %1459 = vmatpush2.bf16.msra.mxu0 0
        %1460 = vmatprep.mubr.bf16.mxu0 0
        %1461 = vmatmul.mubr.bf16.gmra.mxu0 %v1359
        %v1462 = vpop.f32.mrf.mxu0
        %v1463 = vadd.f32 %v1379, %v1462
        %v1464 = vpop.f32.mrf.mxu0
        %v1465 = vpop.f32.mrf.mxu0
        %v1466 = vpop.f32.mrf.mxu0
        %1467 = vdwg.mxu0
        %v1468 = vmax.f32 %v1463, 0.0
        %v1469 = vmin.f32 %v1463, 0.0
        %v1470 = vstv %s1358
        %v1471 = vmul.f32 %v1470, %v1469
        %v1472 = vadd.f32 %v1468, %v1471
        %v1473 = vpack.c.bf16 %v1472, %v1472
        %v1474 = vld [vmem:[%s432] sm:$0xf]
        %v1475 = vld [vmem:[%s432 + $0x4] sm:$0xf]
        %v1476 = vld [vmem:[%s432 + $0x8] sm:$0xf]
        %v1477 = vld [vmem:[%s432 + $0xc] sm:$0xf]
        %v1478 = vld [vmem:[%s432 + $0x10] sm:$0xf]
        %v1479 = vld [vmem:[%s432 + $0x14] sm:$0xf]
        %v1480 = vld [vmem:[%s432 + $0x18] sm:$0xf]
        %v1481 = vld [vmem:[%s432 + $0x1c] sm:$0xf]
        %v1482 = vld [vmem:[%s432 + $0x20] sm:$0xf]
        %v1483 = vld [vmem:[%s432 + $0x24] sm:$0xf]
        %v1484 = vld [vmem:[%s432 + $0x28] sm:$0xf]
        %v1485 = vld [vmem:[%s432 + $0x2c] sm:$0xf]
        %v1486 = vld [vmem:[%s432 + $0x30] sm:$0xf]
        %v1487 = vld [vmem:[%s432 + $0x34] sm:$0xf]
        %v1488 = vld [vmem:[%s432 + $0x38] sm:$0xf]
        %v1489 = vld [vmem:[%s432 + $0x3c] sm:$0xf]
        %v1490 = vlaneseq
        %v1491 = vshrl.u32 %v1490, 7
        %v1492 = vsub.s32 7, %v1491
        %v1493 = vrot.slane %v502, %v1492
        %v1510 = vunpack.c.l.b16 %v1474
        %v1511 = vunpack.c.l.b16 %v1475
        %v1512 = vunpack.c.l.b16 %v1476
        %v1513 = vunpack.c.l.b16 %v1477
        %v1514 = vunpack.c.l.b16 %v1478
        %v1515 = vunpack.c.l.b16 %v1479
        %v1516 = vunpack.c.l.b16 %v1480
        %v1517 = vunpack.c.l.b16 %v1481
        %v1518 = vunpack.c.l.b16 %v1482
        %v1519 = vunpack.c.l.b16 %v1483
        %v1520 = vunpack.c.l.b16 %v1484
        %v1521 = vunpack.c.l.b16 %v1485
        %v1522 = vunpack.c.l.b16 %v1486
        %v1523 = vunpack.c.l.b16 %v1487
        %v1524 = vunpack.c.l.b16 %v1488
        %v1525 = vunpack.c.l.b16 %v1489
        %v1526 = vpack.c.b16 %v1511, %v1510
        %v1527 = vpack.c.b16 %v1513, %v1512
        %v1528 = vpack.c.b16 %v1515, %v1514
        %v1529 = vpack.c.b16 %v1517, %v1516
        %v1530 = vpack.c.b16 %v1519, %v1518
        %v1531 = vpack.c.b16 %v1521, %v1520
        %v1532 = vpack.c.b16 %v1523, %v1522
        %v1533 = vpack.c.b16 %v1525, %v1524
        %1542 = vmatprep.subr.bf16.mxu0 0
        %1543 = vmatpush1.bf16.msra.mxu0 %v1533
        %1544 = vmatprep.subr.bf16.mxu0 0
        %1545 = vmatpush1.bf16.msra.mxu0 %v1532
        %1546 = vmatprep.subr.bf16.mxu0 0
        %1547 = vmatpush1.bf16.msra.mxu0 %v1531
        %1548 = vmatprep.subr.bf16.mxu0 0
        %1549 = vmatpush1.bf16.msra.mxu0 %v1530
        %1550 = vmatprep.subr.bf16.mxu0 0
        %1551 = vmatpush1.bf16.msra.mxu0 %v1529
        %1552 = vmatprep.subr.bf16.mxu0 0
        %1553 = vmatpush1.bf16.msra.mxu0 %v1528
        %1554 = vmatprep.subr.bf16.mxu0 0
        %1555 = vmatpush1.bf16.msra.mxu0 %v1527
        %1556 = vmatprep.subr.bf16.mxu0 0
        %1557 = vmatpush1.bf16.msra.mxu0 %v1526
        %1558 = vmatprep.subr.bf16.mxu0 0
        %1559 = vmatpush2.bf16.msra.mxu0 0
        %1560 = vmatprep.subr.bf16.mxu0 0
        %1561 = vmatpush2.bf16.msra.mxu0 0
        %1562 = vmatprep.subr.bf16.mxu0 0
        %1563 = vmatpush2.bf16.msra.mxu0 0
        %1564 = vmatprep.subr.bf16.mxu0 0
        %1565 = vmatpush2.bf16.msra.mxu0 0
        %1566 = vmatprep.subr.bf16.mxu0 0
        %1567 = vmatpush2.bf16.msra.mxu0 0
        %1568 = vmatprep.subr.bf16.mxu0 0
        %1569 = vmatpush2.bf16.msra.mxu0 0
        %1570 = vmatprep.subr.bf16.mxu0 0
        %1571 = vmatpush2.bf16.msra.mxu0 0
        %1572 = vmatprep.subr.bf16.mxu0 0
        %1573 = vmatpush2.bf16.msra.mxu0 0
        %1574 = vmatprep.mubr.bf16.mxu0 0
        %1575 = vmatmul.mubr.bf16.gmra.mxu0 %v1473
        %v1576 = vpop.f32.mrf.mxu0
        %v1577 = vadd.f32 %v1493, %v1576
        %v1578 = vpop.f32.mrf.mxu0
        %v1579 = vpop.f32.mrf.mxu0
        %v1580 = vpop.f32.mrf.mxu0
        %1581 = vdwg.mxu0
        %v1582 = vadd.f32 %v1357, %v1577
        %1583 = vadd.xlane.f32.xlu0 %v1582
        %v1584 = vpop.xlane.xlu0 %1583
        %v1585 = vmul.f32 %v1584, 0.03125
        %v1586 = vmul.f32 %v1582, %v1582
        %1587 = vadd.xlane.f32.xlu0 %v1586
        %v1588 = vpop.xlane.xlu0 %1587
        %v1589 = vmul.f32 %v1588, 0.03125
        %v1590 = vmul.f32 %v1585, %v1585
        %v1591 = vsub.f32 %v1589, %v1590
        %v1592 = vsub.f32 %v1582, %v1585
        %v1593 = vadd.f32 %v1591, 1e-05
        %v1594 = vrsqrt.pop %v1593
        %v1595 = vmul.f32 %v1592, %v1594
        %v1596 = vlaneseq
        %v1597 = vshrl.u32 %v1596, 7
        %v1598 = vsub.s32 0, %v1597
        %v1599 = vrot.slane %v503, %v1598
        %v1600 = vmul.f32 %v1595, %v1599
        %v1601 = vlaneseq
        %v1602 = vshrl.u32 %v1601, 7
        %v1603 = vsub.s32 1, %v1602
        %v1604 = vrot.slane %v503, %v1603
        %v1605 = vadd.f32 %v1600, %v1604
        %1606 = vst [vmem:[%s488] sm:$0xff] %v1605
        %s1607 = sand.u32 %s228, 1
        %s1608 = scalar_lea.sflag [#allocation4], %s1607
        %s1609 = sand.u32 %s228, 1
        %s1610 = smul.addr %s1609, 8
        %s1611 = scalar_lea.vmem [#allocation13], %s1610
        // Predicated region
        $region77: #{tpu_custom_call.1} parent=47 // pred_check
          %p1612 = pneg %p238
        $region78: #{tpu_custom_call.1} parent=47 // pred_check_branch
          %1614 = sbr.rel (%p1612) target = $region80
        $region79: #{tpu_custom_call.1} parent=47 // pred_region
          %s1616 = ssub.s32 128, 128
          %1617 = vsyncadd %s1608, %s1616
          %s1618 = smul.addr %s35, 128
          %s1619 = scalar_lea.hbm %s7, %s1618
          %s1621 = sshll.u32 %s1611, 4
          %s1622 = int_to_ptr.vmem [resolvable:$true] %s1621
          %1624 = dma.vmem_to_hbm [thread:$0]  %s1622, 128, %s1619, %s1608
        $region80: #{tpu_custom_call.1} parent=47 // pred_fallthru
          _
      $region48: #{tpu_custom_call.1} parent=5 // pred_fallthru
        _
      %p1625 = scmp.le.s32.totalorder 2, %s26
      // Predicated region
      $region81: #{tpu_custom_call.1} parent=5 // pred_check
        %p1626 = pneg %p1625
      $region82: #{tpu_custom_call.1} parent=5 // pred_check_branch
        %1628 = sbr.rel (%p1626) target = $region84
      $region83: #{tpu_custom_call.1} parent=5 // pred_region
        %s1629 = ssub.s32 %s26, 2
        // Predicated region
        $region85: #{tpu_custom_call.1} parent=83 // pred_check
          %p1630 = pneg %p244
        $region86: #{tpu_custom_call.1} parent=83 // pred_check_branch
          %1632 = sbr.rel (%p1630) target = $region88
        $region87: #{tpu_custom_call.1} parent=83 // pred_region
          %s1633 = sand.u32 %s229, 1
          %s1634 = scalar_lea.sflag [#allocation4], %s1633
          %s1635 = sand.u32 %s229, 1
          %s1636 = smul.addr %s1635, 8
          %s1637 = scalar_lea.vmem [#allocation13], %s1636
          %1638 = dma.done %s1634, 128
        $region88: #{tpu_custom_call.1} parent=83 // pred_fallthru
          _
      $region84: #{tpu_custom_call.1} parent=5 // pred_fallthru
        _
    $region6: #{tpu_custom_call.1} parent=1 // loop_footer
      %s30 = sadd.s32 1, %s26
    $region7: #{tpu_custom_call.1} parent=1 // loop_footer_branch
      %25 = sbr.rel target = $region3
    $region8: #{tpu_custom_call.1} parent=1 // loop_exit
      _
    %1639 = vsyncpa [#allocation3], 1
    %s1640 = scalar_lea.sflag [#allocation3], 1
    %1641 = vsyncpa %s1640, 1
    %1642 = vsyncpa [#allocation8], 1
    %s1643 = scalar_lea.sflag [#allocation8], 1
    %1644 = vsyncpa %s1643, 1
    %1645 = vsyncpa [#allocation11], 1
    %s1646 = scalar_lea.sflag [#allocation11], 1
    %1647 = vsyncpa %s1646, 1
    %1648 = vsyncpa [#allocation4], 1
    %s1649 = scalar_lea.sflag [#allocation4], 1
    %1650 = vsyncpa %s1649, 1
    %1651 = vsyncpa [#allocation5], 1
    %s1652 = scalar_lea.sflag [#allocation5], 1
    %1653 = vsyncpa %s1652, 1

</llo_original>
